<compile_context>
chip_gen: v7x
topology: tpu7x:2x2x1
jax: 0.10.0
libtpu: 0.0.40
codegen_flags: <defaults>
</compile_context>

<pallas_src>
import functools

import jax
import jax.numpy as jnp
from jax import lax
from jax.experimental import pallas as pl
from jax.experimental.pallas import tpu as pltpu


# -----------------------------------------------------------------------------
# Kernel
# -----------------------------------------------------------------------------
def _basic_block_kernel(*refs, stride, has_proj, nblk, H, Ho, Cin, Cmid, Cout,
                        W, Wo, pw1, win1, starts1, pw2, win2, starts2,
                        winsc, startssc):
    if has_proj:
        (x_ref, w1_ref, b1_ref, w2_ref, b2_ref, wsc_ref,
         o_ref, xpad_ref, midpad_ref) = refs
    else:
        (x_ref, w1_ref, b1_ref, w2_ref, b2_ref,
         o_ref, xpad_ref, midpad_ref) = refs
        wsc_ref = None

    f32, bf16 = jnp.float32, jnp.bfloat16
    B = nblk
    M = B * Ho                       # matmul M dimension
    K1 = W * Cin
    K2 = Wo * Cmid
    pn1 = pw1 * Cmid                 # conv1 output panel lane width
    pn2 = pw2 * Cout                 # conv2 / shortcut / block output panel width
    kw1 = win1 * Cin                 # conv1 K-window width (lanes)
    kw2 = win2 * Cmid
    kwsc = winsc * Cin

    # --- stage the input block into the row-padded scratch ---------------------
    # Scratch rows: [zero | image rows 0..H-1 | zero]; the W-direction padding is
    # folded into the banded weights, so only the two border rows are zeroed.
    xdt = xpad_ref.dtype             # bf16 (stride 1) or f32 (stride 2)
    zrow = jnp.zeros((B, 1, K1), xdt)
    xpad_ref[:, 0:1, :] = zrow
    xpad_ref[:, H + 1:H + 2, :] = zrow
    xpad_ref[:, 1:H + 1, :] = x_ref[...].astype(xdt)

    if stride == 1:
        def conv1_rows(kh, c0, cw):
            return xpad_ref[:, kh:kh + Ho, c0:c0 + cw].reshape(M, cw)

        def sc_rows(c0, cw):
            return xpad_ref[:, 1:1 + Ho, c0:c0 + cw].reshape(M, cw)
    else:
        # Strided vertical tap selection done once per tap on the f32 scratch
        # (full lane width), shared by every output-column panel and by the 1x1
        # shortcut; per-panel K windows are cheap value-level slices.
        taps = [xpad_ref[:, pl.ds(kh, Ho, stride=stride), :].astype(bf16)
                for kh in range(3)]

        def conv1_rows(kh, c0, cw):
            return taps[kh][:, :, c0:c0 + cw].reshape(M, cw)

        def sc_rows(c0, cw):
            return taps[1][:, :, c0:c0 + cw].reshape(M, cw)

    def mid_rows(kh, c0, cw):        # conv2 input (always stride 1, bf16)
        return midpad_ref[:, kh:kh + Ho, c0:c0 + cw].reshape(M, cw)

    # --- conv1 (BN1 scale folded into weights) + bias + ReLU -> midpad scratch -
    zrow2 = jnp.zeros((B, 1, K2), bf16)
    midpad_ref[:, 0:1, :] = zrow2
    midpad_ref[:, Ho + 1:Ho + 2, :] = zrow2
    for g, start in enumerate(starts1):
        c0 = start * Cin
        acc = None
        for kh in range(3):
            rows = conv1_rows(kh, c0, kw1).astype(bf16)
            part = jnp.dot(rows, w1_ref[g, kh], preferred_element_type=f32)
            acc = part if acc is None else acc + part
        o0 = g * pn1
        y1 = jnp.maximum(acc + b1_ref[:, o0:o0 + pn1], 0.0)
        midpad_ref[:, 1:Ho + 1, o0:o0 + pn1] = y1.astype(bf16).reshape(B, Ho, pn1)

    # --- conv2 (+BN2 bias [+shortcut BN bias]) + shortcut + ReLU -> output ------
    for g, start in enumerate(starts2):
        c0 = start * Cmid
        acc = None
        for kh in range(3):
            rows = mid_rows(kh, c0, kw2)
            part = jnp.dot(rows, w2_ref[g, kh], preferred_element_type=f32)
            acc = part if acc is None else acc + part
        o0 = g * pn2
        y2 = acc + b2_ref[:, o0:o0 + pn2]
        if has_proj:
            csc = startssc[g] * Cin
            rows = sc_rows(csc, kwsc).astype(bf16)
            y2 = y2 + jnp.dot(rows, wsc_ref[g], preferred_element_type=f32)
        else:
            # identity shortcut: stride == 1, Cin == Cout, H == Ho, K1 == N2
            y2 = y2 + x_ref[:, :, o0:o0 + pn2].astype(f32).reshape(M, pn2)
        o_ref[:, :, o0:o0 + pn2] = (
            jnp.maximum(y2, 0.0).astype(o_ref.dtype).reshape(B, Ho, pn2))


# -----------------------------------------------------------------------------
# Wrapper-side packing: banded panel weights + folded BN
# -----------------------------------------------------------------------------
def _device_kind():
    try:
        return jax.devices()[0].device_kind.lower()
    except Exception:
        return ""


def _is_megacore():
    k = _device_kind()
    return ("7x" in k) or ("v7" in k)


def _default_panel_lanes():
    return 128 if "v5" in _device_kind() else 256


def _bn_fold(gamma, beta, mean, var, eps=1e-5):
    scale = (gamma / jnp.sqrt(var + eps)).astype(jnp.float32)
    bias = (beta - mean * scale).astype(jnp.float32)
    return scale, bias


def _pick_panel_wo(out_w, cout, max_lanes):
    """Largest divisor p of out_w with p*cout a multiple of 128 and <= max_lanes;
    falls back to a single full-width panel."""
    best = None
    for p in range(1, out_w + 1):
        if out_w % p:
            continue
        lanes = p * cout
        if lanes % 128 == 0 and lanes <= max_lanes:
            best = p
    return best if best is not None else out_w


def _conv_band_panels(w_oihw, in_w, out_w, stride, panel_wo, scale=None,
                      dtype=jnp.bfloat16):
    """Panelled block-banded conv weights.

    Returns (bands, starts, win):
      bands : (G, KH, win*I, panel_wo*O); panel g, vertical tap kh maps the
              lane-dense input window (cols [starts[g], starts[g]+win)) to the
              panel's output columns.  Horizontal taps, W zero-padding and the
              (optional) folded BN scale live in the band.
      starts: python ints, per-panel K-window start column.
    """
    O, I, KH, KW = w_oihw.shape
    pad = KW // 2
    wt = jnp.transpose(w_oihw, (2, 3, 1, 0)).astype(jnp.float32)     # (KH,KW,I,O)
    if scale is not None:
        wt = wt * scale[None, None, None, :]
    G = out_w // panel_wo
    win = min(stride * (panel_wo - 1) + KW, in_w)

    panels, starts = [], []
    for g in range(G):
        start = min(max(stride * g * panel_wo - pad, 0), in_w - win)
        starts.append(start)
        # coverage check: every in-range input column this panel needs is inside
        # its K window.
        lo = max(stride * g * panel_wo - pad, 0)
        hi = min(stride * ((g + 1) * panel_wo - 1) + pad, in_w - 1)
        assert start <= lo and hi < start + win, (g, start, win, lo, hi)

        wo = jnp.arange(g * panel_wo, (g + 1) * panel_wo)
        tap_mats = []
        for kh in range(KH):
            acc = jnp.zeros((win, I, panel_wo, O), jnp.float32)
            for kw in range(KW):
                c = stride * wo + kw - pad                    # absolute input col
                rel = c - start
                hit = ((jnp.arange(win)[:, None] == rel[None, :]) &
                       (c[None, :] >= 0) & (c[None, :] < in_w)).astype(jnp.float32)
                acc = acc + hit[:, None, :, None] * wt[kh, kw][None, :, None, :]
            tap_mats.append(acc.reshape(win * I, panel_wo * O))
        panels.append(jnp.stack(tap_mats, 0))
    bands = jnp.stack(panels, 0).astype(dtype)     # (G, KH, win*I, panel_wo*O)
    return bands, starts, win


def pack_basic_block(params, H, W, stride, *, panel_lanes=None, eps=1e-5):
    """One-time weight/BN packing for a block (reuse across calls when chaining)."""
    Cmid, Cin = params["w1"].shape[0], params["w1"].shape[1]
    Cout = params["w2"].shape[0]
    Ho = (H - 1) // stride + 1
    Wo = (W - 1) // stride + 1
    has_proj = (stride != 1) or (Cin != Cout)
    if panel_lanes is None:
        panel_lanes = _default_panel_lanes()

    s1, b1 = _bn_fold(*params["bn1"], eps=eps)
    s2, b2 = _bn_fold(*params["bn2"], eps=eps)

    pw1 = _pick_panel_wo(Wo, Cmid, panel_lanes)
    pw2 = _pick_panel_wo(Wo, Cout, panel_lanes)

    w1p, starts1, win1 = _conv_band_panels(params["w1"], W, Wo, stride, pw1, scale=s1)
    w2p, starts2, win2 = _conv_band_panels(params["w2"], Wo, Wo, 1, pw2, scale=s2)
    b1t = jnp.tile(b1, Wo)[None, :]                       # (1, Wo*Cmid)
    b2t = jnp.tile(b2, Wo)[None, :]                       # (1, Wo*Cout)

    if has_proj:
        ssc, bsc = _bn_fold(*params["bnsc"], eps=eps)
        wscp, startssc, winsc = _conv_band_panels(
            params["wsc"], W, Wo, stride, pw2, scale=ssc)
        wscp = wscp[:, 0]                                  # KH == 1 for the 1x1
        b2t = b2t + jnp.tile(bsc, Wo)[None, :]             # fold shortcut BN bias
    else:
        wscp, startssc, winsc = None, (), 0

    return dict(H=H, W=W, Ho=Ho, Wo=Wo, Cin=Cin, Cmid=Cmid, Cout=Cout,
                stride=stride, has_proj=has_proj,
                pw1=pw1, win1=win1, starts1=tuple(starts1),
                pw2=pw2, win2=win2, starts2=tuple(starts2),
                winsc=winsc, startssc=tuple(startssc),
                w1p=w1p, b1=b1t, w2p=w2p, b2=b2t, wscp=wscp)


def _pick_batch_block(n, max_blk, multi_core, per_image_bytes, act_budget):
    if per_image_bytes > 0:
        max_blk = max(1, min(max_blk, act_budget // per_image_bytes))
    divisors = [d for d in range(1, min(n, max_blk) + 1) if n % d == 0]
    if multi_core:
        # v7x megacore: want an even number of grid steps so both TCs get work.
        even = [d for d in divisors if (n // d) % 2 == 0]
        if even:
            return max(even)
    return max(divisors)


# -----------------------------------------------------------------------------
# Rows-layout entry point (chainable between blocks) and NCHW wrapper
# -----------------------------------------------------------------------------
def basic_block_apply_rows(x_rows, packed, *, max_batch_block=32):
    """x_rows: (N, H, W*Cin) bf16  ->  (N, Ho, Wo*Cout) bf16."""
    p = packed
    N, H, K1 = x_rows.shape
    assert H == p["H"] and K1 == p["W"] * p["Cin"]
    Ho, Wo, stride = p["Ho"], p["Wo"], p["stride"]
    K2, N2 = Wo * p["Cmid"], Wo * p["Cout"]
    N1 = Wo * p["Cmid"]
    megacore = _is_megacore()
    xpad_dtype = jnp.bfloat16 if stride == 1 else jnp.float32

    per_img = ((H + 2) * K1 * (2 if stride == 1 else 4)    # xpad scratch
               + (Ho + 2) * K2 * 2                          # midpad scratch
               + 2 * H * K1 * 2                             # x double-buffer
               + 2 * Ho * N2 * 2)                           # out double-buffer
    act_budget = (16 << 20) if megacore else (24 << 20)
    nblk = _pick_batch_block(N, max_batch_block, megacore, per_img, act_budget)
    grid = (N // nblk,)

    kernel = functools.partial(
        _basic_block_kernel, stride=stride, has_proj=p["has_proj"], nblk=nblk,
        H=H, Ho=Ho, Cin=p["Cin"], Cmid=p["Cmid"], Cout=p["Cout"],
        W=p["W"], Wo=Wo,
        pw1=p["pw1"], win1=p["win1"], starts1=p["starts1"],
        pw2=p["pw2"], win2=p["win2"], starts2=p["starts2"],
        winsc=p["winsc"], startssc=p["startssc"])

    in_specs = [
        pl.BlockSpec((nblk, H, K1), lambda n: (n, 0, 0)),        # x rows (bf16)
        pl.BlockSpec(p["w1p"].shape, lambda n: (0, 0, 0, 0)),    # conv1 panel bands
        pl.BlockSpec((1, N1), lambda n: (0, 0)),                 # conv1 bias
        pl.BlockSpec(p["w2p"].shape, lambda n: (0, 0, 0, 0)),    # conv2 panel bands
        pl.BlockSpec((1, N2), lambda n: (0, 0)),                 # conv2 (+sc) bias
    ]
    args = [x_rows.astype(jnp.bfloat16), p["w1p"], p["b1"], p["w2p"], p["b2"]]
    if p["has_proj"]:
        in_specs.append(pl.BlockSpec(p["wscp"].shape, lambda n: (0, 0, 0)))
        args.append(p["wscp"])

    return pl.pallas_call(
        kernel,
        out_shape=jax.ShapeDtypeStruct((N, Ho, N2), jnp.bfloat16),
        grid=grid,
        in_specs=in_specs,
        out_specs=pl.BlockSpec((nblk, Ho, N2), lambda n: (n, 0, 0)),
        scratch_shapes=[pltpu.VMEM((nblk, H + 2, K1), xpad_dtype),
                        pltpu.VMEM((nblk, Ho + 2, K2), jnp.bfloat16)],
        compiler_params=pltpu.CompilerParams(
            dimension_semantics=("parallel",),
            vmem_limit_bytes=48 * 1024 * 1024),
    )(*args)


def basic_block_forward(x_nchw, params, *, stride=1, max_batch_block=32):
    # TODO(synk): when chaining blocks, stay in the (N, H, W*C) rows layout and
    # reuse pack_basic_block() outputs; the NCHW<->rows transposes here exist
    # only for drop-in parity with the PyTorch module interface.
    N, Cin, H, W = x_nchw.shape
    packed = pack_basic_block(params, H, W, stride)
    x_rows = (jnp.transpose(x_nchw, (0, 2, 3, 1))
              .reshape(N, H, W * Cin).astype(jnp.bfloat16))
    out_rows = basic_block_apply_rows(x_rows, packed,
                                      max_batch_block=max_batch_block)
    Ho, Wo, Cout = packed["Ho"], packed["Wo"], packed["Cout"]
    return jnp.transpose(out_rows.reshape(N, Ho, Wo, Cout),
                         (0, 3, 1, 2)).astype(jnp.float32)


# -----------------------------------------------------------------------------
# Pure-JAX reference (same math, XLA convs) for validation
# -----------------------------------------------------------------------------
def basic_block_reference(x_nchw, params, *, stride=1):
    def conv(x, w, s, pad):
        return lax.conv_general_dilated(
            x, w, (s, s), ((pad, pad), (pad, pad)),
            dimension_numbers=("NCHW", "OIHW", "NCHW"))

    def bn(x, gamma, beta, mean, var, eps=1e-5):
        scale = gamma / jnp.sqrt(var + eps)
        bias = beta - mean * scale
        return x * scale[None, :, None, None] + bias[None, :, None, None]

    out = conv(x_nchw, params["w1"], stride, 1)
    out = jax.nn.relu(bn(out, *params["bn1"]))
    out = conv(out, params["w2"], 1, 1)
    out = bn(out, *params["bn2"])
    Cin = x_nchw.shape[1]
    Cout = params["w2"].shape[0]
    if stride != 1 or Cin != Cout:
        sc = bn(conv(x_nchw, params["wsc"], stride, 0), *params["bnsc"])
    else:
        sc = x_nchw
    return jax.nn.relu(out + sc)


# -----------------------------------------------------------------------------
# Self-test
# -----------------------------------------------------------------------------
if __name__ == "__main__":
    root = jax.random.PRNGKey(0)

    def bn_params(k, c):
        k1, k2, k3, k4 = jax.random.split(k, 4)
        gamma = jax.random.uniform(k1, (c,), jnp.float32, 0.5, 1.5)
        beta = jax.random.normal(k2, (c,), jnp.float32) * 0.1
        mean = jax.random.normal(k3, (c,), jnp.float32) * 0.1
        var = jax.random.uniform(k4, (c,), jnp.float32, 0.5, 1.5)
        return (gamma, beta, mean, var)

    def make_case(key, N, in_c, out_c, H, W):
        ks = jax.random.split(key, 7)
        params = {
            "w1": jax.random.normal(ks[0], (out_c, in_c, 3, 3), jnp.float32) * 0.1,
            "bn1": bn_params(ks[1], out_c),
            "w2": jax.random.normal(ks[2], (out_c, out_c, 3, 3), jnp.float32) * 0.1,
            "bn2": bn_params(ks[3], out_c),
            "wsc": jax.random.normal(ks[4], (out_c, in_c, 1, 1), jnp.float32) * 0.1,
            "bnsc": bn_params(ks[5], out_c),
        }
        x = jax.random.normal(ks[6], (N, in_c, H, W), jnp.float32)
        return x, params

    cases = [
        ("proj_stride1",    dict(N=2, in_c=4,  out_c=8,  H=16, W=16), 1),
        ("identity",        dict(N=2, in_c=8,  out_c=8,  H=16, W=16), 1),
        ("proj_stride2",    dict(N=2, in_c=8,  out_c=16, H=16, W=16), 2),
        ("identity_panels", dict(N=2, in_c=16, out_c=16, H=32, W=32), 1),
        ("proj_s2_panels",  dict(N=2, in_c=8,  out_c=32, H=32, W=32), 2),
    ]
    keys = jax.random.split(root, len(cases))
    for k, (name, cfg, stride) in zip(keys, cases):
        x, params = make_case(k, **cfg)
        out = jax.block_until_ready(basic_block_forward(x, params, stride=stride))
        ref = basic_block_reference(x, params, stride=stride)
        assert out.shape == ref.shape, (name, out.shape, ref.shape)
        max_err = float(jnp.max(jnp.abs(out - ref)))
        rel_err = float(jnp.linalg.norm(out - ref) /
                        (jnp.linalg.norm(ref) + 1e-12))
        # bf16 activations / weights / output with f32 accumulation.
        assert max_err < 2e-1 and rel_err < 3e-2, (name, max_err, rel_err)

    print("KERNEL_OK")
</pallas_src>

<mosaic_0001>
module attributes {stable_mosaic.version = 11 : i64} {
  func.func @_basic_block_kernel(%arg0: i32, %arg1: memref<2x16x64xbf16, #tpu.memory_space<vmem>>, %arg2: memref<1x3x64x128xbf16, #tpu.memory_space<vmem>>, %arg3: memref<1x128xf32, #tpu.memory_space<vmem>>, %arg4: memref<1x3x128x128xbf16, #tpu.memory_space<vmem>>, %arg5: memref<1x128xf32, #tpu.memory_space<vmem>>, %arg6: memref<1x64x128xbf16, #tpu.memory_space<vmem>>, %arg7: memref<2x16x128xbf16, #tpu.memory_space<vmem>>, %arg8: memref<2x18x64xbf16, #tpu.memory_space<vmem>>, %arg9: memref<2x18x128xbf16, #tpu.memory_space<vmem>>) attributes {dimension_semantics = [#tpu.dimension_semantics<parallel>], iteration_bounds = array<i64: 1>, scalar_prefetch = 0 : i64, scratch_operands = 2 : i64, tpu.core_type = #tpu.core_type<tc>, window_params = [{transform_indices = @transform_0, window_bounds = array<i64: 2, 16, 64>}, {pipeline_mode = #tpu.pipeline_mode<synchronous>, transform_indices = @transform_1, window_bounds = array<i64: 1, 3, 64, 128>}, {pipeline_mode = #tpu.pipeline_mode<synchronous>, transform_indices = @transform_2, window_bounds = array<i64: 1, 128>}, {pipeline_mode = #tpu.pipeline_mode<synchronous>, transform_indices = @transform_3, window_bounds = array<i64: 1, 3, 128, 128>}, {pipeline_mode = #tpu.pipeline_mode<synchronous>, transform_indices = @transform_4, window_bounds = array<i64: 1, 128>}, {pipeline_mode = #tpu.pipeline_mode<synchronous>, transform_indices = @transform_5, window_bounds = array<i64: 1, 64, 128>}, {transform_indices = @transform_6, window_bounds = array<i64: 2, 16, 128>}]} {
    %cst = arith.constant 0.000000e+00 : bf16
    %0 = vector.broadcast %cst : bf16 to vector<2x1x64xbf16>
    %c0 = arith.constant 0 : index
    %c0_0 = arith.constant 0 : index
    %c0_1 = arith.constant 0 : index
    %1 = vector.load %arg8[%c0, %c0_0, %c0_1] : memref<2x18x64xbf16, #tpu.memory_space<vmem>>, vector<2x1x64xbf16>
    tpu.vector_store %arg8[%c0, %c0_0, %c0_1], %0 {strides = array<i32>} : memref<2x18x64xbf16, #tpu.memory_space<vmem>>, vector<2x1x64xbf16>,
    %c0_2 = arith.constant 0 : index
    %c17 = arith.constant 17 : index
    %c0_3 = arith.constant 0 : index
    %2 = vector.load %arg8[%c0_2, %c17, %c0_3] : memref<2x18x64xbf16, #tpu.memory_space<vmem>>, vector<2x1x64xbf16>
    tpu.vector_store %arg8[%c0_2, %c17, %c0_3], %0 {strides = array<i32>} : memref<2x18x64xbf16, #tpu.memory_space<vmem>>, vector<2x1x64xbf16>,
    %c0_4 = arith.constant 0 : index
    %c0_5 = arith.constant 0 : index
    %c0_6 = arith.constant 0 : index
    %3 = vector.load %arg1[%c0_4, %c0_5, %c0_6] : memref<2x16x64xbf16, #tpu.memory_space<vmem>>, vector<2x16x64xbf16>
    %c0_7 = arith.constant 0 : index
    %c1 = arith.constant 1 : index
    %c0_8 = arith.constant 0 : index
    %4 = vector.load %arg8[%c0_7, %c1, %c0_8] : memref<2x18x64xbf16, #tpu.memory_space<vmem>>, vector<2x16x64xbf16>
    tpu.vector_store %arg8[%c0_7, %c1, %c0_8], %3 {strides = array<i32>} : memref<2x18x64xbf16, #tpu.memory_space<vmem>>, vector<2x16x64xbf16>,
    %cst_9 = arith.constant 0.000000e+00 : bf16
    %5 = vector.broadcast %cst_9 : bf16 to vector<2x1x128xbf16>
    %c0_10 = arith.constant 0 : index
    %c0_11 = arith.constant 0 : index
    %c0_12 = arith.constant 0 : index
    %6 = vector.load %arg9[%c0_10, %c0_11, %c0_12] : memref<2x18x128xbf16, #tpu.memory_space<vmem>>, vector<2x1x128xbf16>
    tpu.vector_store %arg9[%c0_10, %c0_11, %c0_12], %5 {strides = array<i32>} : memref<2x18x128xbf16, #tpu.memory_space<vmem>>, vector<2x1x128xbf16>,
    %c0_13 = arith.constant 0 : index
    %c17_14 = arith.constant 17 : index
    %c0_15 = arith.constant 0 : index
    %7 = vector.load %arg9[%c0_13, %c17_14, %c0_15] : memref<2x18x128xbf16, #tpu.memory_space<vmem>>, vector<2x1x128xbf16>
    tpu.vector_store %arg9[%c0_13, %c17_14, %c0_15], %5 {strides = array<i32>} : memref<2x18x128xbf16, #tpu.memory_space<vmem>>, vector<2x1x128xbf16>,
    %c0_16 = arith.constant 0 : index
    %c0_17 = arith.constant 0 : index
    %c0_18 = arith.constant 0 : index
    %8 = vector.load %arg8[%c0_16, %c0_17, %c0_18] : memref<2x18x64xbf16, #tpu.memory_space<vmem>>, vector<2x16x64xbf16>
    %9 = vector.shape_cast %8 : vector<2x16x64xbf16> to vector<32x64xbf16>
    %c0_19 = arith.constant 0 : index
    %c0_20 = arith.constant 0 : index
    %c0_21 = arith.constant 0 : index
    %c0_22 = arith.constant 0 : index
    %10 = vector.load %arg2[%c0_19, %c0_20, %c0_21, %c0_22] : memref<1x3x64x128xbf16, #tpu.memory_space<vmem>>, vector<1x1x64x128xbf16>
    %11 = vector.shape_cast %10 : vector<1x1x64x128xbf16> to vector<64x128xbf16>
    %cst_23 = arith.constant dense<0.000000e+00> : vector<32x128xf32>
    %12 = tpu.matmul %9, %11, %cst_23 {dimension_numbers = #tpu.dot_dimension_numbers<[1], [0], [0], [1], [0, 0, 1, 1], [], []>} : vector<32x64xbf16>, vector<64x128xbf16>, vector<32x128xf32> -> vector<32x128xf32>
    %c0_24 = arith.constant 0 : index
    %c1_25 = arith.constant 1 : index
    %c0_26 = arith.constant 0 : index
    %13 = vector.load %arg8[%c0_24, %c1_25, %c0_26] : memref<2x18x64xbf16, #tpu.memory_space<vmem>>, vector<2x16x64xbf16>
    %14 = vector.shape_cast %13 : vector<2x16x64xbf16> to vector<32x64xbf16>
    %c0_27 = arith.constant 0 : index
    %c1_28 = arith.constant 1 : index
    %c0_29 = arith.constant 0 : index
    %c0_30 = arith.constant 0 : index
    %15 = vector.load %arg2[%c0_27, %c1_28, %c0_29, %c0_30] : memref<1x3x64x128xbf16, #tpu.memory_space<vmem>>, vector<1x1x64x128xbf16>
    %16 = vector.shape_cast %15 : vector<1x1x64x128xbf16> to vector<64x128xbf16>
    %cst_31 = arith.constant dense<0.000000e+00> : vector<32x128xf32>
    %17 = tpu.matmul %14, %16, %cst_31 {dimension_numbers = #tpu.dot_dimension_numbers<[1], [0], [0], [1], [0, 0, 1, 1], [], []>} : vector<32x64xbf16>, vector<64x128xbf16>, vector<32x128xf32> -> vector<32x128xf32>
    %18 = arith.addf %12, %17 : vector<32x128xf32>
    %c0_32 = arith.constant 0 : index
    %c2 = arith.constant 2 : index
    %c0_33 = arith.constant 0 : index
    %19 = vector.load %arg8[%c0_32, %c2, %c0_33] : memref<2x18x64xbf16, #tpu.memory_space<vmem>>, vector<2x16x64xbf16>
    %20 = vector.shape_cast %19 : vector<2x16x64xbf16> to vector<32x64xbf16>
    %c0_34 = arith.constant 0 : index
    %c2_35 = arith.constant 2 : index
    %c0_36 = arith.constant 0 : index
    %c0_37 = arith.constant 0 : index
    %21 = vector.load %arg2[%c0_34, %c2_35, %c0_36, %c0_37] : memref<1x3x64x128xbf16, #tpu.memory_space<vmem>>, vector<1x1x64x128xbf16>
    %22 = vector.shape_cast %21 : vector<1x1x64x128xbf16> to vector<64x128xbf16>
    %cst_38 = arith.constant dense<0.000000e+00> : vector<32x128xf32>
    %23 = tpu.matmul %20, %22, %cst_38 {dimension_numbers = #tpu.dot_dimension_numbers<[1], [0], [0], [1], [0, 0, 1, 1], [], []>} : vector<32x64xbf16>, vector<64x128xbf16>, vector<32x128xf32> -> vector<32x128xf32>
    %24 = arith.addf %18, %23 : vector<32x128xf32>
    %c0_39 = arith.constant 0 : index
    %c0_40 = arith.constant 0 : index
    %25 = vector.load %arg3[%c0_39, %c0_40] : memref<1x128xf32, #tpu.memory_space<vmem>>, vector<1x128xf32>
    %26 = vector.broadcast %25 : vector<1x128xf32> to vector<32x128xf32>
    %27 = arith.addf %24, %26 : vector<32x128xf32>
    %cst_41 = arith.constant 0.000000e+00 : f32
    %28 = vector.broadcast %cst_41 : f32 to vector<32x128xf32>
    %29 = arith.maximumf %27, %28 : vector<32x128xf32>
    %30 = arith.truncf %29 : vector<32x128xf32> to vector<32x128xbf16>
    %31 = vector.shape_cast %30 : vector<32x128xbf16> to vector<2x16x128xbf16>
    %c0_42 = arith.constant 0 : index
    %c1_43 = arith.constant 1 : index
    %c0_44 = arith.constant 0 : index
    %32 = vector.load %arg9[%c0_42, %c1_43, %c0_44] : memref<2x18x128xbf16, #tpu.memory_space<vmem>>, vector<2x16x128xbf16>
    tpu.vector_store %arg9[%c0_42, %c1_43, %c0_44], %31 {strides = array<i32>} : memref<2x18x128xbf16, #tpu.memory_space<vmem>>, vector<2x16x128xbf16>,
    %c0_45 = arith.constant 0 : index
    %c0_46 = arith.constant 0 : index
    %c0_47 = arith.constant 0 : index
    %33 = vector.load %arg9[%c0_45, %c0_46, %c0_47] : memref<2x18x128xbf16, #tpu.memory_space<vmem>>, vector<2x16x128xbf16>
    %34 = vector.shape_cast %33 : vector<2x16x128xbf16> to vector<32x128xbf16>
    %c0_48 = arith.constant 0 : index
    %c0_49 = arith.constant 0 : index
    %c0_50 = arith.constant 0 : index
    %c0_51 = arith.constant 0 : index
    %35 = vector.load %arg4[%c0_48, %c0_49, %c0_50, %c0_51] : memref<1x3x128x128xbf16, #tpu.memory_space<vmem>>, vector<1x1x128x128xbf16>
    %36 = vector.shape_cast %35 : vector<1x1x128x128xbf16> to vector<128x128xbf16>
    %cst_52 = arith.constant dense<0.000000e+00> : vector<32x128xf32>
    %37 = tpu.matmul %34, %36, %cst_52 {dimension_numbers = #tpu.dot_dimension_numbers<[1], [0], [0], [1], [0, 0, 1, 1], [], []>} : vector<32x128xbf16>, vector<128x128xbf16>, vector<32x128xf32> -> vector<32x128xf32>
    %c0_53 = arith.constant 0 : index
    %c1_54 = arith.constant 1 : index
    %c0_55 = arith.constant 0 : index
    %38 = vector.load %arg9[%c0_53, %c1_54, %c0_55] : memref<2x18x128xbf16, #tpu.memory_space<vmem>>, vector<2x16x128xbf16>
    %39 = vector.shape_cast %38 : vector<2x16x128xbf16> to vector<32x128xbf16>
    %c0_56 = arith.constant 0 : index
    %c1_57 = arith.constant 1 : index
    %c0_58 = arith.constant 0 : index
    %c0_59 = arith.constant 0 : index
    %40 = vector.load %arg4[%c0_56, %c1_57, %c0_58, %c0_59] : memref<1x3x128x128xbf16, #tpu.memory_space<vmem>>, vector<1x1x128x128xbf16>
    %41 = vector.shape_cast %40 : vector<1x1x128x128xbf16> to vector<128x128xbf16>
    %cst_60 = arith.constant dense<0.000000e+00> : vector<32x128xf32>
    %42 = tpu.matmul %39, %41, %cst_60 {dimension_numbers = #tpu.dot_dimension_numbers<[1], [0], [0], [1], [0, 0, 1, 1], [], []>} : vector<32x128xbf16>, vector<128x128xbf16>, vector<32x128xf32> -> vector<32x128xf32>
    %43 = arith.addf %37, %42 : vector<32x128xf32>
    %c0_61 = arith.constant 0 : index
    %c2_62 = arith.constant 2 : index
    %c0_63 = arith.constant 0 : index
    %44 = vector.load %arg9[%c0_61, %c2_62, %c0_63] : memref<2x18x128xbf16, #tpu.memory_space<vmem>>, vector<2x16x128xbf16>
    %45 = vector.shape_cast %44 : vector<2x16x128xbf16> to vector<32x128xbf16>
    %c0_64 = arith.constant 0 : index
    %c2_65 = arith.constant 2 : index
    %c0_66 = arith.constant 0 : index
    %c0_67 = arith.constant 0 : index
    %46 = vector.load %arg4[%c0_64, %c2_65, %c0_66, %c0_67] : memref<1x3x128x128xbf16, #tpu.memory_space<vmem>>, vector<1x1x128x128xbf16>
    %47 = vector.shape_cast %46 : vector<1x1x128x128xbf16> to vector<128x128xbf16>
    %cst_68 = arith.constant dense<0.000000e+00> : vector<32x128xf32>
    %48 = tpu.matmul %45, %47, %cst_68 {dimension_numbers = #tpu.dot_dimension_numbers<[1], [0], [0], [1], [0, 0, 1, 1], [], []>} : vector<32x128xbf16>, vector<128x128xbf16>, vector<32x128xf32> -> vector<32x128xf32>
    %49 = arith.addf %43, %48 : vector<32x128xf32>
    %c0_69 = arith.constant 0 : index
    %c0_70 = arith.constant 0 : index
    %50 = vector.load %arg5[%c0_69, %c0_70] : memref<1x128xf32, #tpu.memory_space<vmem>>, vector<1x128xf32>
    %51 = vector.broadcast %50 : vector<1x128xf32> to vector<32x128xf32>
    %52 = arith.addf %49, %51 : vector<32x128xf32>
    %c0_71 = arith.constant 0 : index
    %c1_72 = arith.constant 1 : index
    %c0_73 = arith.constant 0 : index
    %53 = vector.load %arg8[%c0_71, %c1_72, %c0_73] : memref<2x18x64xbf16, #tpu.memory_space<vmem>>, vector<2x16x64xbf16>
    %54 = vector.shape_cast %53 : vector<2x16x64xbf16> to vector<32x64xbf16>
    %c0_74 = arith.constant 0 : index
    %c0_75 = arith.constant 0 : index
    %c0_76 = arith.constant 0 : index
    %55 = vector.load %arg6[%c0_74, %c0_75, %c0_76] : memref<1x64x128xbf16, #tpu.memory_space<vmem>>, vector<1x64x128xbf16>
    %56 = vector.shape_cast %55 : vector<1x64x128xbf16> to vector<64x128xbf16>
    %cst_77 = arith.constant dense<0.000000e+00> : vector<32x128xf32>
    %57 = tpu.matmul %54, %56, %cst_77 {dimension_numbers = #tpu.dot_dimension_numbers<[1], [0], [0], [1], [0, 0, 1, 1], [], []>} : vector<32x64xbf16>, vector<64x128xbf16>, vector<32x128xf32> -> vector<32x128xf32>
    %58 = arith.addf %52, %57 : vector<32x128xf32>
    %cst_78 = arith.constant 0.000000e+00 : f32
    %59 = vector.broadcast %cst_78 : f32 to vector<32x128xf32>
    %60 = arith.maximumf %58, %59 : vector<32x128xf32>
    %61 = arith.truncf %60 : vector<32x128xf32> to vector<32x128xbf16>
    %62 = vector.shape_cast %61 : vector<32x128xbf16> to vector<2x16x128xbf16>
    %c0_79 = arith.constant 0 : index
    %c0_80 = arith.constant 0 : index
    %c0_81 = arith.constant 0 : index
    %63 = vector.load %arg7[%c0_79, %c0_80, %c0_81] : memref<2x16x128xbf16, #tpu.memory_space<vmem>>, vector<2x16x128xbf16>
    tpu.vector_store %arg7[%c0_79, %c0_80, %c0_81], %62 {strides = array<i32>} : memref<2x16x128xbf16, #tpu.memory_space<vmem>>, vector<2x16x128xbf16>,
    return
  }
  func.func @transform_0(%arg0: i32) -> (i32, i32, i32) {
    %c0_i32 = arith.constant 0 : i32
    %c0_i32_0 = arith.constant 0 : i32
    %c0_i32_1 = arith.constant 0 : i32
    return %arg0, %c0_i32, %c0_i32_0 : i32, i32, i32
  }
  func.func @transform_1(%arg0: i32) -> (i32, i32, i32, i32) {
    %c0_i32 = arith.constant 0 : i32
    %c0_i32_0 = arith.constant 0 : i32
    %c0_i32_1 = arith.constant 0 : i32
    %c0_i32_2 = arith.constant 0 : i32
    %c0_i32_3 = arith.constant 0 : i32
    return %c0_i32, %c0_i32_0, %c0_i32_1, %c0_i32_2 : i32, i32, i32, i32
  }
  func.func @transform_2(%arg0: i32) -> (i32, i32) {
    %c0_i32 = arith.constant 0 : i32
    %c0_i32_0 = arith.constant 0 : i32
    %c0_i32_1 = arith.constant 0 : i32
    return %c0_i32, %c0_i32_0 : i32, i32
  }
  func.func @transform_3(%arg0: i32) -> (i32, i32, i32, i32) {
    %c0_i32 = arith.constant 0 : i32
    %c0_i32_0 = arith.constant 0 : i32
    %c0_i32_1 = arith.constant 0 : i32
    %c0_i32_2 = arith.constant 0 : i32
    %c0_i32_3 = arith.constant 0 : i32
    return %c0_i32, %c0_i32_0, %c0_i32_1, %c0_i32_2 : i32, i32, i32, i32
  }
  func.func @transform_4(%arg0: i32) -> (i32, i32) {
    %c0_i32 = arith.constant 0 : i32
    %c0_i32_0 = arith.constant 0 : i32
    %c0_i32_1 = arith.constant 0 : i32
    return %c0_i32, %c0_i32_0 : i32, i32
  }
  func.func @transform_5(%arg0: i32) -> (i32, i32, i32) {
    %c0_i32 = arith.constant 0 : i32
    %c0_i32_0 = arith.constant 0 : i32
    %c0_i32_1 = arith.constant 0 : i32
    %c0_i32_2 = arith.constant 0 : i32
    return %c0_i32, %c0_i32_0, %c0_i32_1 : i32, i32, i32
  }
  func.func @transform_6(%arg0: i32) -> (i32, i32, i32) {
    %c0_i32 = arith.constant 0 : i32
    %c0_i32_0 = arith.constant 0 : i32
    %c0_i32_1 = arith.constant 0 : i32
    return %arg0, %c0_i32, %c0_i32_0 : i32, i32, i32
  }
}

</mosaic_0001>

<llo_original>
// kernel: tpu_custom_call.1
$region0: #{tpu_custom_call.1}
  #allocation0 [shape = 'u32[]', space=smem, size = 0x4, offset = 0x4, fixed_abs, tag = 'smem constant byte address 0x4 - core index']
  #allocation1 [shape = 'u32[144,128]{1,0:T(1,128)}', space=vmem, size = 0x12000, scoped, tag = 'internal scratch']
  #allocation2 [shape = 'bf16[2,18,64]{2,1,0:T(8,128)(2,1)}', space=vmem, size = 0x3000, scoped, tag = 'scratch operand']
  #allocation3 [shape = 'bf16[2,18,128]{2,1,0:T(8,128)(2,1)}', space=vmem, size = 0x3000, scoped, tag = 'scratch operand']
  %s0 = inlined_call_operand.hbm [shape: bf16[2,16,64], index: 0, kind: input, shape index: {}]
  %s1 = inlined_call_operand.hbm [shape: bf16[1,3,64,128], index: 1, kind: input, shape index: {}]
  %s2 = inlined_call_operand.vmem [shape: f32[1,128], index: 2, kind: input, shape index: {}]
  %s3 = inlined_call_operand.hbm [shape: bf16[1,3,128,128], index: 3, kind: input, shape index: {}]
  %s4 = inlined_call_operand.vmem [shape: f32[1,128], index: 4, kind: input, shape index: {}]
  %s5 = inlined_call_operand.hbm [shape: bf16[1,64,128], index: 5, kind: input, shape index: {}]
  %s6 = inlined_call_operand.hbm [shape: bf16[2,16,128], index: 6, kind: output, shape index: {}]
  %s7 = sld [smem:[#allocation0]]
  $region50: #{tpu_custom_call.1} parent=0
    _
  %s9 = ssub.s32 1, %s7
  %s10 = scalar_select 0, %s9, %s7
  $region1: #{tpu_custom_call.1} parent=0
    #allocation4 [shape = 'u8[8192]{0}', space=vmem, size = 0x2000, scoped, tag = 'input window, operand 0, single buffered']
    #allocation5 [shape = 's32[1]{0}', space=sflag, size = 0x4, scoped, tag = 'scoped memory for tpu_custom_call.1']
    #allocation6 [shape = 's32[1]{0}', space=sflag, size = 0x4, scoped, tag = 'scoped memory for tpu_custom_call.1']
    #allocation7 [shape = 'u8[49152]{0}', space=vmem, size = 0xc000, scoped, tag = 'input window, operand 1, single buffered']
    #allocation8 [shape = 's32[1]{0}', space=sflag, size = 0x4, scoped, tag = 'scoped memory for tpu_custom_call.1']
    #allocation9 [shape = 'u8[98304]{0}', space=vmem, size = 0x18000, scoped, tag = 'input window, operand 3, single buffered']
    #allocation10 [shape = 'u8[16384]{0}', space=vmem, size = 0x4000, scoped, tag = 'input window, operand 5, single buffered']
    #allocation11 [shape = 's32[1]{0}', space=sflag, size = 0x4, scoped, tag = 'scoped memory for tpu_custom_call.1']
    #allocation12 [shape = 'u8[8192]{0}', space=vmem, size = 0x2000, scoped, tag = 'output window, operand 0, single buffered']
    %11 = vsyncpa [#allocation5], 0
    %12 = vsyncpa [#allocation8], 0
    %13 = vsyncpa [#allocation11], 0
    %14 = vsyncpa [#allocation6], 0
    // Predicated region
    $region2: #{tpu_custom_call.1} parent=1 // pred_check
      _
    $region3: #{tpu_custom_call.1} parent=1 // pred_check_branch
      %16 = sbr.rel (0) target = $region5
    $region4: #{tpu_custom_call.1} parent=1 // pred_region
      %s18 = ssub.s32 256, 256
      %19 = vsyncadd [#allocation5], %s18
      %s20 = sshll.u32 [#allocation4], 4
      %s21 = int_to_ptr.vmem [resolvable:$true] %s20
      %26 = dma.hbm_to_vmem [thread:$0]  %s0, 256, %s21, [#allocation5], 64, 64, 4
    $region5: #{tpu_custom_call.1} parent=1 // pred_fallthru
      _
    // Predicated region
    $region6: #{tpu_custom_call.1} parent=1 // pred_check
      _
    $region7: #{tpu_custom_call.1} parent=1 // pred_check_branch
      %28 = sbr.rel (0) target = $region9
    $region8: #{tpu_custom_call.1} parent=1 // pred_region
      %s30 = ssub.s32 1536, 1536
      %31 = vsyncadd [#allocation8], %s30
      %s32 = sshll.u32 [#allocation7], 4
      %s33 = int_to_ptr.vmem [resolvable:$true] %s32
      %38 = dma.hbm_to_vmem [thread:$0]  %s1, 1536, %s33, [#allocation8], 64, 64, 4
    $region9: #{tpu_custom_call.1} parent=1 // pred_fallthru
      _
    // Predicated region
    $region10: #{tpu_custom_call.1} parent=1 // pred_check
      _
    $region11: #{tpu_custom_call.1} parent=1 // pred_check_branch
      %40 = sbr.rel (0) target = $region13
    $region12: #{tpu_custom_call.1} parent=1 // pred_region
      _
    $region13: #{tpu_custom_call.1} parent=1 // pred_fallthru
      _
    // Predicated region
    $region14: #{tpu_custom_call.1} parent=1 // pred_check
      _
    $region15: #{tpu_custom_call.1} parent=1 // pred_check_branch
      %42 = sbr.rel (0) target = $region17
    $region16: #{tpu_custom_call.1} parent=1 // pred_region
      %s44 = ssub.s32 3072, 3072
      %45 = vsyncadd [#allocation8], %s44
      %s46 = sshll.u32 [#allocation9], 4
      %s47 = int_to_ptr.vmem [resolvable:$true] %s46
      %52 = dma.hbm_to_vmem [thread:$0]  %s3, 3072, %s47, [#allocation8], 64, 64, 4
    $region17: #{tpu_custom_call.1} parent=1 // pred_fallthru
      _
    // Predicated region
    $region18: #{tpu_custom_call.1} parent=1 // pred_check
      _
    $region19: #{tpu_custom_call.1} parent=1 // pred_check_branch
      %54 = sbr.rel (0) target = $region21
    $region20: #{tpu_custom_call.1} parent=1 // pred_region
      _
    $region21: #{tpu_custom_call.1} parent=1 // pred_fallthru
      _
    // Predicated region
    $region22: #{tpu_custom_call.1} parent=1 // pred_check
      _
    $region23: #{tpu_custom_call.1} parent=1 // pred_check_branch
      %56 = sbr.rel (0) target = $region25
    $region24: #{tpu_custom_call.1} parent=1 // pred_region
      %s58 = ssub.s32 512, 512
      %59 = vsyncadd [#allocation11], %s58
      %s60 = sshll.u32 [#allocation10], 4
      %s61 = int_to_ptr.vmem [resolvable:$true] %s60
      %66 = dma.hbm_to_vmem [thread:$0]  %s5, 512, %s61, [#allocation11], 64, 64, 4
    $region25: #{tpu_custom_call.1} parent=1 // pred_fallthru
      _
    // Predicated region
    $region26: #{tpu_custom_call.1} parent=1 // pred_check
      _
    $region27: #{tpu_custom_call.1} parent=1 // pred_check_branch
      %68 = sbr.rel (0) target = $region29
    $region28: #{tpu_custom_call.1} parent=1 // pred_region
      %69 = dma.done [#allocation5], 256
    $region29: #{tpu_custom_call.1} parent=1 // pred_fallthru
      _
    // Predicated region
    $region30: #{tpu_custom_call.1} parent=1 // pred_check
      _
    $region31: #{tpu_custom_call.1} parent=1 // pred_check_branch
      %71 = sbr.rel (0) target = $region33
    $region32: #{tpu_custom_call.1} parent=1 // pred_region
      %72 = dma.done [#allocation8], 1536
    $region33: #{tpu_custom_call.1} parent=1 // pred_fallthru
      _
    // Predicated region
    $region34: #{tpu_custom_call.1} parent=1 // pred_check
      _
    $region35: #{tpu_custom_call.1} parent=1 // pred_check_branch
      %74 = sbr.rel (0) target = $region37
    $region36: #{tpu_custom_call.1} parent=1 // pred_region
      %75 = dma.done [#allocation8], 3072
    $region37: #{tpu_custom_call.1} parent=1 // pred_fallthru
      _
    // Predicated region
    $region38: #{tpu_custom_call.1} parent=1 // pred_check
      _
    $region39: #{tpu_custom_call.1} parent=1 // pred_check_branch
      %77 = sbr.rel (0) target = $region41
    $region40: #{tpu_custom_call.1} parent=1 // pred_region
      %78 = dma.done [#allocation11], 512
    $region41: #{tpu_custom_call.1} parent=1 // pred_fallthru
      _
    %vm80 = vcmask 516096
    %vm81 = vsmask.f32 256
    %vm82 = vmand %vm80, %vm81
    %v83 = vld [vmem:[#allocation2] sm:$0x1]
    %v84 = vsel %vm82, 0, %v83
    %85 = vst [vmem:[#allocation2] sm:$0x1] %v84
    %v86 = vld [vmem:[#allocation2 + $0xc] sm:$0x1]
    %v87 = vsel %vm82, 0, %v86
    %88 = vst [vmem:[#allocation2 + $0xc] sm:$0x1] %v87
    %vm89 = vsmask.f32 7938
    %vm90 = vmand %vm80, %vm89
    %v91 = vld [vmem:[#allocation2 + $0x8] sm:$0x1]
    %v92 = vsel %vm90, 0, %v91
    %93 = vst [vmem:[#allocation2 + $0x8] sm:$0x1] %v92
    %v94 = vld [vmem:[#allocation2 + $0x14] sm:$0x1]
    %v95 = vsel %vm90, 0, %v94
    %96 = vst [vmem:[#allocation2 + $0x14] sm:$0x1] %v95
    %v97 = vld [vmem:[#allocation4] sm:$0xf]
    %v98 = vld [vmem:[#allocation4 + $0x4] sm:$0xf]
    %v99 = vld [vmem:[#allocation4 + $0x8] sm:$0xf]
    %v100 = vld [vmem:[#allocation4 + $0xc] sm:$0xf]
    %vm101 = vsmask.f32 4368
    %vm102 = vmor %vm81, %vm101
    %v104 = vshrl.u32 %v97, 16
    %v106 = vrot.slane %v104, 7
    %v107 = vshll.u32 %v97, 16
    %v109 = vor.u32 %v106, %v107
    %v110 = vrot.slane %v106, 4
    %v112 = vshrl.u32 %v98, 16
    %v114 = vrot.slane %v112, 7
    %v115 = vshll.u32 %v98, 16
    %v117 = vor.u32 %v114, %v115
    %v118 = vsel %vm102, %v110, %v117
    %v119 = vrot.slane %v114, 4
    %v121 = vshrl.u32 %v99, 16
    %v123 = vrot.slane %v121, 7
    %v124 = vshll.u32 %v99, 16
    %v126 = vor.u32 %v123, %v124
    %v127 = vrot.slane %v123, 4
    %v129 = vshrl.u32 %v100, 16
    %v131 = vrot.slane %v129, 7
    %v132 = vshll.u32 %v100, 16
    %v134 = vor.u32 %v131, %v132
    %v135 = vsel %vm102, %v127, %v134
    %v136 = vrot.slane %v131, 4
    %vm143 = vcmask 519168
    %vm144 = vmand %vm143, %vm89
    %v145 = vld [vmem:[#allocation2] sm:$0xf]
    %v146 = vsel %vm144, %v109, %v145
    %147 = vst [vmem:[#allocation2] sm:$0xf] %v146
    %vm148 = vcmask 519168
    %149 = vst.msk [vmem:[#allocation2 + $0x4] sm:$0xf] %vm148, %v118
    %v150 = vld [vmem:[#allocation2 + $0x8] sm:$0x1]
    %v151 = vsel %vm82, %v119, %v150
    %152 = vst [vmem:[#allocation2 + $0x8] sm:$0x1] %v151
    %v153 = vld [vmem:[#allocation2 + $0xc] sm:$0xf]
    %v154 = vsel %vm144, %v126, %v153
    %155 = vst [vmem:[#allocation2 + $0xc] sm:$0xf] %v154
    %156 = vst.msk [vmem:[#allocation2 + $0x10] sm:$0xf] %vm148, %v135
    %v157 = vld [vmem:[#allocation2 + $0x14] sm:$0x1]
    %v158 = vsel %vm82, %v136, %v157
    %159 = vst [vmem:[#allocation2 + $0x14] sm:$0x1] %v158
    %vm160 = vcmask 1040384
    %vm161 = vmand %vm160, %vm81
    %v162 = vld [vmem:[#allocation3] sm:$0x1]
    %v163 = vsel %vm161, 0, %v162
    %164 = vst [vmem:[#allocation3] sm:$0x1] %v163
    %v165 = vld [vmem:[#allocation3 + $0xc] sm:$0x1]
    %v166 = vsel %vm161, 0, %v165
    %167 = vst [vmem:[#allocation3 + $0xc] sm:$0x1] %v166
    %vm168 = vmand %vm160, %vm89
    %v169 = vld [vmem:[#allocation3 + $0x8] sm:$0x1]
    %v170 = vsel %vm168, 0, %v169
    %171 = vst [vmem:[#allocation3 + $0x8] sm:$0x1] %v170
    %v172 = vld [vmem:[#allocation3 + $0x14] sm:$0x1]
    %v173 = vsel %vm168, 0, %v172
    %174 = vst [vmem:[#allocation3 + $0x14] sm:$0x1] %v173
    %v175 = vld [vmem:[#allocation2] sm:$0xf]
    %v176 = vld [vmem:[#allocation2 + $0x4] sm:$0xf]
    %v177 = vld [vmem:[#allocation2 + $0xc] sm:$0xf]
    %v178 = vld [vmem:[#allocation2 + $0x10] sm:$0xf]
    %v179 = vld [vmem:[#allocation7] sm:$0xf]
    %v180 = vld [vmem:[#allocation7 + $0x4] sm:$0xf]
    %v181 = vld [vmem:[#allocation7 + $0x8] sm:$0xf]
    %v182 = vld [vmem:[#allocation7 + $0xc] sm:$0xf]
    %v183 = vld [vmem:[#allocation7 + $0x10] sm:$0xf]
    %v184 = vld [vmem:[#allocation7 + $0x14] sm:$0xf]
    %v185 = vld [vmem:[#allocation7 + $0x18] sm:$0xf]
    %v186 = vld [vmem:[#allocation7 + $0x1c] sm:$0xf]
    %v187 = vld [vmem:[#allocation2 + $0x8] sm:$0x1]
    %v188 = vld [vmem:[#allocation2 + $0x14] sm:$0x1]
    %vm189 = vsmask.f32 3328
    %vm190 = vsmask.f32 7440
    %vm191 = vmor %vm189, %vm190
    %v193 = vshrl.u32 %v175, 16
    %v195 = vrot.slane %v193, 4
    %v196 = vshll.u32 %v175, 16
    %v198 = vrot.slane %v196, 5
    %v199 = vor.u32 %v195, %v198
    %v200 = vrot.slane %v199, 4
    %v202 = vshll.u32 %v176, 16
    %v204 = vrot.slane %v202, 5
    %v205 = vsel %vm191, %v200, %v204
    %v206 = vshrl.u32 %v176, 16
    %v208 = vrot.slane %v206, 4
    %v209 = vor.u32 %v208, %v204
    %v210 = vrot.slane %v209, 4
    %v212 = vshll.u32 %v187, 16
    %v214 = vrot.slane %v212, 5
    %v215 = vsel %vm191, %v210, %v214
    %v217 = vshrl.u32 %v177, 16
    %v219 = vrot.slane %v217, 4
    %v220 = vshll.u32 %v177, 16
    %v222 = vrot.slane %v220, 5
    %v223 = vor.u32 %v219, %v222
    %v224 = vrot.slane %v223, 4
    %v226 = vshll.u32 %v178, 16
    %v228 = vrot.slane %v226, 5
    %v229 = vsel %vm191, %v224, %v228
    %v230 = vshrl.u32 %v178, 16
    %v232 = vrot.slane %v230, 4
    %v233 = vor.u32 %v232, %v228
    %v234 = vrot.slane %v233, 4
    %v236 = vshll.u32 %v188, 16
    %v238 = vrot.slane %v236, 5
    %v239 = vsel %vm191, %v234, %v238
    %s240 = scalar_lea.vmem [#allocation7], 32
    %v241 = vld [vmem:[%s240] sm:$0xf]
    %v242 = vld [vmem:[%s240 + $0x4] sm:$0xf]
    %v243 = vld [vmem:[%s240 + $0x8] sm:$0xf]
    %v244 = vld [vmem:[%s240 + $0xc] sm:$0xf]
    %v245 = vld [vmem:[%s240 + $0x10] sm:$0xf]
    %v246 = vld [vmem:[%s240 + $0x14] sm:$0xf]
    %v247 = vld [vmem:[%s240 + $0x18] sm:$0xf]
    %v248 = vld [vmem:[%s240 + $0x1c] sm:$0xf]
    %v249 = vunpack.c.l.b16 %v205
    %v250 = vunpack.c.l.b16 %v215
    %v251 = vunpack.c.l.b16 %v229
    %v252 = vunpack.c.l.b16 %v239
    %v253 = vpack.c.b16 %v250, %v249
    %v254 = vpack.c.b16 %v252, %v251
    %v263 = vunpack.c.l.b16 %v241
    %v264 = vunpack.c.l.b16 %v242
    %v265 = vunpack.c.l.b16 %v243
    %v266 = vunpack.c.l.b16 %v244
    %v267 = vunpack.c.l.b16 %v245
    %v268 = vunpack.c.l.b16 %v246
    %v269 = vunpack.c.l.b16 %v247
    %v270 = vunpack.c.l.b16 %v248
    %v271 = vpack.c.b16 %v264, %v263
    %v272 = vpack.c.b16 %v266, %v265
    %v273 = vpack.c.b16 %v268, %v267
    %v274 = vpack.c.b16 %v270, %v269
    %vm279 = vcmask 523264
    %v281 = vsel %vm279, %v253, 0
    %v284 = vsel %vm279, %v254, 0
    %286 = vmatprep.subr.bf16.mxu0 0
    %287 = vmatpush1.bf16.msra.mxu0 %v271
    %288 = vmatprep.subr.bf16.mxu0 0
    %289 = vmatpush1.bf16.msra.mxu0 %v272
    %290 = vmatprep.subr.bf16.mxu0 0
    %291 = vmatpush1.bf16.msra.mxu0 %v273
    %292 = vmatprep.subr.bf16.mxu0 0
    %293 = vmatpush1.bf16.msra.mxu0 %v274
    %294 = vmatprep.subr.bf16.mxu0 0
    %295 = vmatpush1.bf16.msra.mxu0 0
    %296 = vmatprep.subr.bf16.mxu0 0
    %297 = vmatpush1.bf16.msra.mxu0 0
    %298 = vmatprep.subr.bf16.mxu0 0
    %299 = vmatpush1.bf16.msra.mxu0 0
    %300 = vmatprep.subr.bf16.mxu0 0
    %301 = vmatpush1.bf16.msra.mxu0 0
    %302 = vmatprep.subr.bf16.mxu0 0
    %303 = vmatpush1.bf16.msra.mxu0 0
    %304 = vmatprep.subr.bf16.mxu0 0
    %305 = vmatpush1.bf16.msra.mxu0 0
    %306 = vmatprep.subr.bf16.mxu0 0
    %307 = vmatpush1.bf16.msra.mxu0 0
    %308 = vmatprep.subr.bf16.mxu0 0
    %309 = vmatpush1.bf16.msra.mxu0 0
    %310 = vmatprep.subr.bf16.mxu0 0
    %311 = vmatpush1.bf16.msra.mxu0 0
    %312 = vmatprep.subr.bf16.mxu0 0
    %313 = vmatpush1.bf16.msra.mxu0 0
    %314 = vmatprep.subr.bf16.mxu0 0
    %315 = vmatpush1.bf16.msra.mxu0 0
    %316 = vmatprep.subr.bf16.mxu0 0
    %317 = vmatpush1.bf16.msra.mxu0 0
    %318 = vmatprep.mubr.bf16.mxu0 0
    %319 = vmatmul.mubr.bf16.gmra.mrb[0].mxu0 %v281
    %v320 = vpop.f32.mrb[0].mxu0
    %v321 = vadd.f32 0.0, %v320
    %v322 = vpop.f32.mrb[0].mxu0
    %v323 = vpop.f32.mrb[0].mxu0
    %v324 = vadd.f32 0.0, %v323
    %v325 = vpop.f32.mrb[0].mxu0
    %326 = vmatprep.mubr.bf16.mxu0 0
    %327 = vmatmul.mubr.bf16.gmra.mrb[0].mxu0 %v284
    %v328 = vpop.f32.mrb[0].mxu0
    %v329 = vadd.f32 0.0, %v328
    %v330 = vpop.f32.mrb[0].mxu0
    %v331 = vpop.f32.mrb[0].mxu0
    %v332 = vadd.f32 0.0, %v331
    %v333 = vpop.f32.mrb[0].mxu0
    %334 = vdwg.mxu0
    %v339 = vunpack.c.l.b16 %v175
    %v340 = vunpack.c.l.b16 %v176
    %v341 = vunpack.c.l.b16 %v177
    %v342 = vunpack.c.l.b16 %v178
    %v343 = vpack.c.b16 %v340, %v339
    %v344 = vpack.c.b16 %v342, %v341
    %v353 = vunpack.c.l.b16 %v179
    %v354 = vunpack.c.l.b16 %v180
    %v355 = vunpack.c.l.b16 %v181
    %v356 = vunpack.c.l.b16 %v182
    %v357 = vunpack.c.l.b16 %v183
    %v358 = vunpack.c.l.b16 %v184
    %v359 = vunpack.c.l.b16 %v185
    %v360 = vunpack.c.l.b16 %v186
    %v361 = vpack.c.b16 %v354, %v353
    %v362 = vpack.c.b16 %v356, %v355
    %v363 = vpack.c.b16 %v358, %v357
    %v364 = vpack.c.b16 %v360, %v359
    %v370 = vsel %vm279, %v343, 0
    %v373 = vsel %vm279, %v344, 0
    %375 = vmatprep.subr.bf16.mxu0 0
    %376 = vmatpush1.bf16.msra.mxu0 %v361
    %377 = vmatprep.subr.bf16.mxu0 0
    %378 = vmatpush1.bf16.msra.mxu0 %v362
    %379 = vmatprep.subr.bf16.mxu0 0
    %380 = vmatpush1.bf16.msra.mxu0 %v363
    %381 = vmatprep.subr.bf16.mxu0 0
    %382 = vmatpush1.bf16.msra.mxu0 %v364
    %383 = vmatprep.subr.bf16.mxu0 0
    %384 = vmatpush1.bf16.msra.mxu0 0
    %385 = vmatprep.subr.bf16.mxu0 0
    %386 = vmatpush1.bf16.msra.mxu0 0
    %387 = vmatprep.subr.bf16.mxu0 0
    %388 = vmatpush1.bf16.msra.mxu0 0
    %389 = vmatprep.subr.bf16.mxu0 0
    %390 = vmatpush1.bf16.msra.mxu0 0
    %391 = vmatprep.subr.bf16.mxu0 0
    %392 = vmatpush1.bf16.msra.mxu0 0
    %393 = vmatprep.subr.bf16.mxu0 0
    %394 = vmatpush1.bf16.msra.mxu0 0
    %395 = vmatprep.subr.bf16.mxu0 0
    %396 = vmatpush1.bf16.msra.mxu0 0
    %397 = vmatprep.subr.bf16.mxu0 0
    %398 = vmatpush1.bf16.msra.mxu0 0
    %399 = vmatprep.subr.bf16.mxu0 0
    %400 = vmatpush1.bf16.msra.mxu0 0
    %401 = vmatprep.subr.bf16.mxu0 0
    %402 = vmatpush1.bf16.msra.mxu0 0
    %403 = vmatprep.subr.bf16.mxu0 0
    %404 = vmatpush1.bf16.msra.mxu0 0
    %405 = vmatprep.subr.bf16.mxu0 0
    %406 = vmatpush1.bf16.msra.mxu0 0
    %407 = vmatprep.mubr.bf16.mxu0 0
    %408 = vmatmul.mubr.bf16.gmra.mrb[0].mxu0 %v370
    %v409 = vpop.f32.mrb[0].mxu0
    %v410 = vadd.f32 %v321, %v409
    %v411 = vpop.f32.mrb[0].mxu0
    %v412 = vpop.f32.mrb[0].mxu0
    %v413 = vadd.f32 %v324, %v412
    %v414 = vpop.f32.mrb[0].mxu0
    %415 = vmatprep.mubr.bf16.mxu0 0
    %416 = vmatmul.mubr.bf16.gmra.mrb[0].mxu0 %v373
    %v417 = vpop.f32.mrb[0].mxu0
    %v418 = vadd.f32 %v329, %v417
    %v419 = vpop.f32.mrb[0].mxu0
    %v420 = vpop.f32.mrb[0].mxu0
    %v421 = vadd.f32 %v332, %v420
    %v422 = vpop.f32.mrb[0].mxu0
    %423 = vdwg.mxu0
    %v424 = vld [vmem:[#allocation2] sm:$0xe]
    %v425 = vld [vmem:[#allocation2 + $0xc] sm:$0xe]
    %vm430 = vcmask 1042432
    %vm431 = vcmask 1046532
    %vm432 = vmor %vm430, %vm431
    %v433 = vrot.slane %v424, 5
    %v434 = vrot.slane %v433, 4
    %v435 = vrot.slane %v176, 5
    %v436 = vsel %vm432, %v434, %v435
    %v437 = vrot.slane %v435, 4
    %v438 = vrot.slane %v187, 5
    %v439 = vsel %vm432, %v437, %v438
    %v440 = vrot.slane %v425, 5
    %v441 = vrot.slane %v440, 4
    %v442 = vrot.slane %v178, 5
    %v443 = vsel %vm432, %v441, %v442
    %v444 = vrot.slane %v442, 4
    %v445 = vrot.slane %v188, 5
    %v446 = vsel %vm432, %v444, %v445
    %s447 = scalar_lea.vmem [#allocation7], 64
    %v448 = vld [vmem:[%s447] sm:$0xf]
    %v449 = vld [vmem:[%s447 + $0x4] sm:$0xf]
    %v450 = vld [vmem:[%s447 + $0x8] sm:$0xf]
    %v451 = vld [vmem:[%s447 + $0xc] sm:$0xf]
    %v452 = vld [vmem:[%s447 + $0x10] sm:$0xf]
    %v453 = vld [vmem:[%s447 + $0x14] sm:$0xf]
    %v454 = vld [vmem:[%s447 + $0x18] sm:$0xf]
    %v455 = vld [vmem:[%s447 + $0x1c] sm:$0xf]
    %v456 = vunpack.c.l.b16 %v436
    %v457 = vunpack.c.l.b16 %v439
    %v458 = vunpack.c.l.b16 %v443
    %v459 = vunpack.c.l.b16 %v446
    %v460 = vpack.c.b16 %v457, %v456
    %v461 = vpack.c.b16 %v459, %v458
    %v470 = vunpack.c.l.b16 %v448
    %v471 = vunpack.c.l.b16 %v449
    %v472 = vunpack.c.l.b16 %v450
    %v473 = vunpack.c.l.b16 %v451
    %v474 = vunpack.c.l.b16 %v452
    %v475 = vunpack.c.l.b16 %v453
    %v476 = vunpack.c.l.b16 %v454
    %v477 = vunpack.c.l.b16 %v455
    %v478 = vpack.c.b16 %v471, %v470
    %v479 = vpack.c.b16 %v473, %v472
    %v480 = vpack.c.b16 %v475, %v474
    %v481 = vpack.c.b16 %v477, %v476
    %v487 = vsel %vm279, %v460, 0
    %v490 = vsel %vm279, %v461, 0
    %492 = vmatprep.subr.bf16.mxu0 0
    %493 = vmatpush1.bf16.msra.mxu0 %v478
    %494 = vmatprep.subr.bf16.mxu0 0
    %495 = vmatpush1.bf16.msra.mxu0 %v479
    %496 = vmatprep.subr.bf16.mxu0 0
    %497 = vmatpush1.bf16.msra.mxu0 %v480
    %498 = vmatprep.subr.bf16.mxu0 0
    %499 = vmatpush1.bf16.msra.mxu0 %v481
    %500 = vmatprep.subr.bf16.mxu0 0
    %501 = vmatpush1.bf16.msra.mxu0 0
    %502 = vmatprep.subr.bf16.mxu0 0
    %503 = vmatpush1.bf16.msra.mxu0 0
    %504 = vmatprep.subr.bf16.mxu0 0
    %505 = vmatpush1.bf16.msra.mxu0 0
    %506 = vmatprep.subr.bf16.mxu0 0
    %507 = vmatpush1.bf16.msra.mxu0 0
    %508 = vmatprep.subr.bf16.mxu0 0
    %509 = vmatpush1.bf16.msra.mxu0 0
    %510 = vmatprep.subr.bf16.mxu0 0
    %511 = vmatpush1.bf16.msra.mxu0 0
    %512 = vmatprep.subr.bf16.mxu0 0
    %513 = vmatpush1.bf16.msra.mxu0 0
    %514 = vmatprep.subr.bf16.mxu0 0
    %515 = vmatpush1.bf16.msra.mxu0 0
    %516 = vmatprep.subr.bf16.mxu0 0
    %517 = vmatpush1.bf16.msra.mxu0 0
    %518 = vmatprep.subr.bf16.mxu0 0
    %519 = vmatpush1.bf16.msra.mxu0 0
    %520 = vmatprep.subr.bf16.mxu0 0
    %521 = vmatpush1.bf16.msra.mxu0 0
    %522 = vmatprep.subr.bf16.mxu0 0
    %523 = vmatpush1.bf16.msra.mxu0 0
    %524 = vmatprep.mubr.bf16.mxu0 0
    %525 = vmatmul.mubr.bf16.gmra.mrb[0].mxu0 %v487
    %v526 = vpop.f32.mrb[0].mxu0
    %v527 = vadd.f32 0.0, %v526
    %v528 = vpop.f32.mrb[0].mxu0
    %v529 = vpop.f32.mrb[0].mxu0
    %v530 = vadd.f32 0.0, %v529
    %v531 = vpop.f32.mrb[0].mxu0
    %532 = vmatprep.mubr.bf16.mxu0 0
    %533 = vmatmul.mubr.bf16.gmra.mrb[0].mxu0 %v490
    %v534 = vpop.f32.mrb[0].mxu0
    %v535 = vadd.f32 0.0, %v534
    %v536 = vpop.f32.mrb[0].mxu0
    %v537 = vpop.f32.mrb[0].mxu0
    %v538 = vadd.f32 0.0, %v537
    %v539 = vpop.f32.mrb[0].mxu0
    %540 = vdwg.mxu0
    %v541 = vadd.f32 %v410, %v527
    %v542 = vadd.f32 %v413, %v530
    %v543 = vadd.f32 %v418, %v535
    %v544 = vadd.f32 %v421, %v538
    %v545 = vld [vmem:[%s2] sm:$0x1]
    %v547 = vlaneseq
    %v548 = vshrl.u32 %v547, 7
    %v549 = vsub.s32 0, %v548
    %v550 = vrot.slane %v545, %v549
    %v552 = vadd.f32 %v541, %v550
    %v553 = vadd.f32 %v542, %v550
    %v554 = vadd.f32 %v543, %v550
    %v555 = vadd.f32 %v544, %v550
    %v556 = vmax.f32 %v552, 0.0
    %v557 = vmax.f32 %v553, 0.0
    %v558 = vmax.f32 %v554, 0.0
    %v559 = vmax.f32 %v555, 0.0
    %v560 = vpack.c.bf16 %v557, %v556
    %v561 = vpack.c.bf16 %v559, %v558
    %v564 = vunpack.c.l.b16 %v560
    %v565 = vunpack.c.h.b16 %v560
    %v566 = vunpack.c.l.b16 %v561
    %v567 = vunpack.c.h.b16 %v561
    %v568 = vpack.c.b16 %v564, %v564
    %v569 = vpack.c.b16 %v565, %v565
    %v570 = vpack.c.b16 %v566, %v566
    %v571 = vpack.c.b16 %v567, %v567
    %v573 = vshrl.u32 %v568, 16
    %v575 = vrot.slane %v573, 7
    %v576 = vshll.u32 %v568, 16
    %v578 = vor.u32 %v575, %v576
    %v579 = vrot.slane %v575, 4
    %v581 = vshrl.u32 %v569, 16
    %v583 = vrot.slane %v581, 7
    %v584 = vshll.u32 %v569, 16
    %v586 = vor.u32 %v583, %v584
    %v587 = vsel %vm102, %v579, %v586
    %v588 = vrot.slane %v583, 4
    %v590 = vshrl.u32 %v570, 16
    %v592 = vrot.slane %v590, 7
    %v593 = vshll.u32 %v570, 16
    %v595 = vor.u32 %v592, %v593
    %v596 = vrot.slane %v592, 4
    %v598 = vshrl.u32 %v571, 16
    %v600 = vrot.slane %v598, 7
    %v601 = vshll.u32 %v571, 16
    %v603 = vor.u32 %v600, %v601
    %v604 = vsel %vm102, %v596, %v603
    %v605 = vrot.slane %v600, 4
    %vm612 = vcmask 1043456
    %vm613 = vmand %vm612, %vm89
    %v614 = vld [vmem:[#allocation3] sm:$0xf]
    %v615 = vsel %vm613, %v578, %v614
    %616 = vst [vmem:[#allocation3] sm:$0xf] %v615
    %617 = vst [vmem:[#allocation3 + $0x4] sm:$0xf] %v587
    %v618 = vld [vmem:[#allocation3 + $0x8] sm:$0x1]
    %v619 = vsel %vm161, %v588, %v618
    %620 = vst [vmem:[#allocation3 + $0x8] sm:$0x1] %v619
    %v621 = vld [vmem:[#allocation3 + $0xc] sm:$0xf]
    %v622 = vsel %vm613, %v595, %v621
    %623 = vst [vmem:[#allocation3 + $0xc] sm:$0xf] %v622
    %624 = vst [vmem:[#allocation3 + $0x10] sm:$0xf] %v604
    %v625 = vld [vmem:[#allocation3 + $0x14] sm:$0x1]
    %v626 = vsel %vm161, %v605, %v625
    %627 = vst [vmem:[#allocation3 + $0x14] sm:$0x1] %v626
    %v628 = vld [vmem:[#allocation3] sm:$0xf]
    %v629 = vld [vmem:[#allocation3 + $0x4] sm:$0xf]
    %v630 = vld [vmem:[#allocation3 + $0xc] sm:$0xf]
    %v631 = vld [vmem:[#allocation3 + $0x10] sm:$0xf]
    %v632 = vld [vmem:[#allocation9] sm:$0xf]
    %v633 = vld [vmem:[#allocation9 + $0x4] sm:$0xf]
    %v634 = vld [vmem:[#allocation9 + $0x8] sm:$0xf]
    %v635 = vld [vmem:[#allocation9 + $0xc] sm:$0xf]
    %v636 = vld [vmem:[#allocation9 + $0x10] sm:$0xf]
    %v637 = vld [vmem:[#allocation9 + $0x14] sm:$0xf]
    %v638 = vld [vmem:[#allocation9 + $0x18] sm:$0xf]
    %v639 = vld [vmem:[#allocation9 + $0x1c] sm:$0xf]
    %v640 = vld [vmem:[#allocation9 + $0x20] sm:$0xf]
    %v641 = vld [vmem:[#allocation9 + $0x24] sm:$0xf]
    %v642 = vld [vmem:[#allocation9 + $0x28] sm:$0xf]
    %v643 = vld [vmem:[#allocation9 + $0x2c] sm:$0xf]
    %v644 = vld [vmem:[#allocation9 + $0x30] sm:$0xf]
    %v645 = vld [vmem:[#allocation9 + $0x34] sm:$0xf]
    %v646 = vld [vmem:[#allocation9 + $0x38] sm:$0xf]
    %v647 = vld [vmem:[#allocation9 + $0x3c] sm:$0xf]
    %v648 = vld [vmem:[#allocation3 + $0x8] sm:$0x1]
    %v649 = vld [vmem:[#allocation3 + $0x14] sm:$0x1]
    %v651 = vshrl.u32 %v628, 16
    %v653 = vrot.slane %v651, 4
    %v654 = vshll.u32 %v628, 16
    %v656 = vrot.slane %v654, 5
    %v657 = vor.u32 %v653, %v656
    %v658 = vrot.slane %v657, 4
    %v660 = vshll.u32 %v629, 16
    %v662 = vrot.slane %v660, 5
    %v663 = vsel %vm191, %v658, %v662
    %v664 = vshrl.u32 %v629, 16
    %v666 = vrot.slane %v664, 4
    %v667 = vor.u32 %v666, %v662
    %v668 = vrot.slane %v667, 4
    %v670 = vshll.u32 %v648, 16
    %v672 = vrot.slane %v670, 5
    %v673 = vsel %vm191, %v668, %v672
    %v675 = vshrl.u32 %v630, 16
    %v677 = vrot.slane %v675, 4
    %v678 = vshll.u32 %v630, 16
    %v680 = vrot.slane %v678, 5
    %v681 = vor.u32 %v677, %v680
    %v682 = vrot.slane %v681, 4
    %v684 = vshll.u32 %v631, 16
    %v686 = vrot.slane %v684, 5
    %v687 = vsel %vm191, %v682, %v686
    %v688 = vshrl.u32 %v631, 16
    %v690 = vrot.slane %v688, 4
    %v691 = vor.u32 %v690, %v686
    %v692 = vrot.slane %v691, 4
    %v694 = vshll.u32 %v649, 16
    %v696 = vrot.slane %v694, 5
    %v697 = vsel %vm191, %v692, %v696
    %s698 = scalar_lea.vmem [#allocation9], 64
    %v699 = vld [vmem:[%s698] sm:$0xf]
    %v700 = vld [vmem:[%s698 + $0x4] sm:$0xf]
    %v701 = vld [vmem:[%s698 + $0x8] sm:$0xf]
    %v702 = vld [vmem:[%s698 + $0xc] sm:$0xf]
    %v703 = vld [vmem:[%s698 + $0x10] sm:$0xf]
    %v704 = vld [vmem:[%s698 + $0x14] sm:$0xf]
    %v705 = vld [vmem:[%s698 + $0x18] sm:$0xf]
    %v706 = vld [vmem:[%s698 + $0x1c] sm:$0xf]
    %v707 = vld [vmem:[%s698 + $0x20] sm:$0xf]
    %v708 = vld [vmem:[%s698 + $0x24] sm:$0xf]
    %v709 = vld [vmem:[%s698 + $0x28] sm:$0xf]
    %v710 = vld [vmem:[%s698 + $0x2c] sm:$0xf]
    %v711 = vld [vmem:[%s698 + $0x30] sm:$0xf]
    %v712 = vld [vmem:[%s698 + $0x34] sm:$0xf]
    %v713 = vld [vmem:[%s698 + $0x38] sm:$0xf]
    %v714 = vld [vmem:[%s698 + $0x3c] sm:$0xf]
    %v715 = vunpack.c.l.b16 %v663
    %v716 = vunpack.c.l.b16 %v673
    %v717 = vunpack.c.l.b16 %v687
    %v718 = vunpack.c.l.b16 %v697
    %v719 = vpack.c.b16 %v716, %v715
    %v720 = vpack.c.b16 %v718, %v717
    %v739 = vunpack.c.l.b16 %v699
    %v740 = vunpack.c.l.b16 %v700
    %v741 = vunpack.c.l.b16 %v701
    %v742 = vunpack.c.l.b16 %v702
    %v743 = vunpack.c.l.b16 %v703
    %v744 = vunpack.c.l.b16 %v704
    %v745 = vunpack.c.l.b16 %v705
    %v746 = vunpack.c.l.b16 %v706
    %v747 = vunpack.c.l.b16 %v707
    %v748 = vunpack.c.l.b16 %v708
    %v749 = vunpack.c.l.b16 %v709
    %v750 = vunpack.c.l.b16 %v710
    %v751 = vunpack.c.l.b16 %v711
    %v752 = vunpack.c.l.b16 %v712
    %v753 = vunpack.c.l.b16 %v713
    %v754 = vunpack.c.l.b16 %v714
    %v755 = vpack.c.b16 %v740, %v739
    %v756 = vpack.c.b16 %v742, %v741
    %v757 = vpack.c.b16 %v744, %v743
    %v758 = vpack.c.b16 %v746, %v745
    %v759 = vpack.c.b16 %v748, %v747
    %v760 = vpack.c.b16 %v750, %v749
    %v761 = vpack.c.b16 %v752, %v751
    %v762 = vpack.c.b16 %v754, %v753
    %771 = vmatprep.subr.bf16.mxu0 0
    %772 = vmatpush1.bf16.msra.mxu0 %v755
    %773 = vmatprep.subr.bf16.mxu0 0
    %774 = vmatpush1.bf16.msra.mxu0 %v756
    %775 = vmatprep.subr.bf16.mxu0 0
    %776 = vmatpush1.bf16.msra.mxu0 %v757
    %777 = vmatprep.subr.bf16.mxu0 0
    %778 = vmatpush1.bf16.msra.mxu0 %v758
    %779 = vmatprep.subr.bf16.mxu0 0
    %780 = vmatpush1.bf16.msra.mxu0 %v759
    %781 = vmatprep.subr.bf16.mxu0 0
    %782 = vmatpush1.bf16.msra.mxu0 %v760
    %783 = vmatprep.subr.bf16.mxu0 0
    %784 = vmatpush1.bf16.msra.mxu0 %v761
    %785 = vmatprep.subr.bf16.mxu0 0
    %786 = vmatpush1.bf16.msra.mxu0 %v762
    %787 = vmatprep.subr.bf16.mxu0 0
    %788 = vmatpush1.bf16.msra.mxu0 0
    %789 = vmatprep.subr.bf16.mxu0 0
    %790 = vmatpush1.bf16.msra.mxu0 0
    %791 = vmatprep.subr.bf16.mxu0 0
    %792 = vmatpush1.bf16.msra.mxu0 0
    %793 = vmatprep.subr.bf16.mxu0 0
    %794 = vmatpush1.bf16.msra.mxu0 0
    %795 = vmatprep.subr.bf16.mxu0 0
    %796 = vmatpush1.bf16.msra.mxu0 0
    %797 = vmatprep.subr.bf16.mxu0 0
    %798 = vmatpush1.bf16.msra.mxu0 0
    %799 = vmatprep.subr.bf16.mxu0 0
    %800 = vmatpush1.bf16.msra.mxu0 0
    %801 = vmatprep.subr.bf16.mxu0 0
    %802 = vmatpush1.bf16.msra.mxu0 0
    %803 = vmatprep.mubr.bf16.mxu0 0
    %804 = vmatmul.mubr.bf16.gmra.mrb[0].mxu0 %v719
    %v805 = vpop.f32.mrb[0].mxu0
    %v806 = vadd.f32 0.0, %v805
    %v807 = vpop.f32.mrb[0].mxu0
    %v808 = vpop.f32.mrb[0].mxu0
    %v809 = vadd.f32 0.0, %v808
    %v810 = vpop.f32.mrb[0].mxu0
    %811 = vmatprep.mubr.bf16.mxu0 0
    %812 = vmatmul.mubr.bf16.gmra.mrb[0].mxu0 %v720
    %v813 = vpop.f32.mrb[0].mxu0
    %v814 = vadd.f32 0.0, %v813
    %v815 = vpop.f32.mrb[0].mxu0
    %v816 = vpop.f32.mrb[0].mxu0
    %v817 = vadd.f32 0.0, %v816
    %v818 = vpop.f32.mrb[0].mxu0
    %819 = vdwg.mxu0
    %v824 = vunpack.c.l.b16 %v628
    %v825 = vunpack.c.l.b16 %v629
    %v826 = vunpack.c.l.b16 %v630
    %v827 = vunpack.c.l.b16 %v631
    %v828 = vpack.c.b16 %v825, %v824
    %v829 = vpack.c.b16 %v827, %v826
    %v848 = vunpack.c.l.b16 %v632
    %v849 = vunpack.c.l.b16 %v633
    %v850 = vunpack.c.l.b16 %v634
    %v851 = vunpack.c.l.b16 %v635
    %v852 = vunpack.c.l.b16 %v636
    %v853 = vunpack.c.l.b16 %v637
    %v854 = vunpack.c.l.b16 %v638
    %v855 = vunpack.c.l.b16 %v639
    %v856 = vunpack.c.l.b16 %v640
    %v857 = vunpack.c.l.b16 %v641
    %v858 = vunpack.c.l.b16 %v642
    %v859 = vunpack.c.l.b16 %v643
    %v860 = vunpack.c.l.b16 %v644
    %v861 = vunpack.c.l.b16 %v645
    %v862 = vunpack.c.l.b16 %v646
    %v863 = vunpack.c.l.b16 %v647
    %v864 = vpack.c.b16 %v849, %v848
    %v865 = vpack.c.b16 %v851, %v850
    %v866 = vpack.c.b16 %v853, %v852
    %v867 = vpack.c.b16 %v855, %v854
    %v868 = vpack.c.b16 %v857, %v856
    %v869 = vpack.c.b16 %v859, %v858
    %v870 = vpack.c.b16 %v861, %v860
    %v871 = vpack.c.b16 %v863, %v862
    %880 = vmatprep.subr.bf16.mxu0 0
    %881 = vmatpush1.bf16.msra.mxu0 %v864
    %882 = vmatprep.subr.bf16.mxu0 0
    %883 = vmatpush1.bf16.msra.mxu0 %v865
    %884 = vmatprep.subr.bf16.mxu0 0
    %885 = vmatpush1.bf16.msra.mxu0 %v866
    %886 = vmatprep.subr.bf16.mxu0 0
    %887 = vmatpush1.bf16.msra.mxu0 %v867
    %888 = vmatprep.subr.bf16.mxu0 0
    %889 = vmatpush1.bf16.msra.mxu0 %v868
    %890 = vmatprep.subr.bf16.mxu0 0
    %891 = vmatpush1.bf16.msra.mxu0 %v869
    %892 = vmatprep.subr.bf16.mxu0 0
    %893 = vmatpush1.bf16.msra.mxu0 %v870
    %894 = vmatprep.subr.bf16.mxu0 0
    %895 = vmatpush1.bf16.msra.mxu0 %v871
    %896 = vmatprep.subr.bf16.mxu0 0
    %897 = vmatpush1.bf16.msra.mxu0 0
    %898 = vmatprep.subr.bf16.mxu0 0
    %899 = vmatpush1.bf16.msra.mxu0 0
    %900 = vmatprep.subr.bf16.mxu0 0
    %901 = vmatpush1.bf16.msra.mxu0 0
    %902 = vmatprep.subr.bf16.mxu0 0
    %903 = vmatpush1.bf16.msra.mxu0 0
    %904 = vmatprep.subr.bf16.mxu0 0
    %905 = vmatpush1.bf16.msra.mxu0 0
    %906 = vmatprep.subr.bf16.mxu0 0
    %907 = vmatpush1.bf16.msra.mxu0 0
    %908 = vmatprep.subr.bf16.mxu0 0
    %909 = vmatpush1.bf16.msra.mxu0 0
    %910 = vmatprep.subr.bf16.mxu0 0
    %911 = vmatpush1.bf16.msra.mxu0 0
    %912 = vmatprep.mubr.bf16.mxu0 0
    %913 = vmatmul.mubr.bf16.gmra.mrb[0].mxu0 %v828
    %v914 = vpop.f32.mrb[0].mxu0
    %v915 = vadd.f32 %v806, %v914
    %v916 = vpop.f32.mrb[0].mxu0
    %v917 = vpop.f32.mrb[0].mxu0
    %v918 = vadd.f32 %v809, %v917
    %v919 = vpop.f32.mrb[0].mxu0
    %920 = vmatprep.mubr.bf16.mxu0 0
    %921 = vmatmul.mubr.bf16.gmra.mrb[0].mxu0 %v829
    %v922 = vpop.f32.mrb[0].mxu0
    %v923 = vadd.f32 %v814, %v922
    %v924 = vpop.f32.mrb[0].mxu0
    %v925 = vpop.f32.mrb[0].mxu0
    %v926 = vadd.f32 %v817, %v925
    %v927 = vpop.f32.mrb[0].mxu0
    %928 = vdwg.mxu0
    %v929 = vld [vmem:[#allocation3] sm:$0xe]
    %v930 = vld [vmem:[#allocation3 + $0xc] sm:$0xe]
    %v935 = vrot.slane %v929, 5
    %v936 = vrot.slane %v935, 4
    %v937 = vrot.slane %v629, 5
    %v938 = vsel %vm432, %v936, %v937
    %v939 = vrot.slane %v937, 4
    %v940 = vrot.slane %v648, 5
    %v941 = vsel %vm432, %v939, %v940
    %v942 = vrot.slane %v930, 5
    %v943 = vrot.slane %v942, 4
    %v944 = vrot.slane %v631, 5
    %v945 = vsel %vm432, %v943, %v944
    %v946 = vrot.slane %v944, 4
    %v947 = vrot.slane %v649, 5
    %v948 = vsel %vm432, %v946, %v947
    %s949 = scalar_lea.vmem [#allocation9], 128
    %v950 = vld [vmem:[%s949] sm:$0xf]
    %v951 = vld [vmem:[%s949 + $0x4] sm:$0xf]
    %v952 = vld [vmem:[%s949 + $0x8] sm:$0xf]
    %v953 = vld [vmem:[%s949 + $0xc] sm:$0xf]
    %v954 = vld [vmem:[%s949 + $0x10] sm:$0xf]
    %v955 = vld [vmem:[%s949 + $0x14] sm:$0xf]
    %v956 = vld [vmem:[%s949 + $0x18] sm:$0xf]
    %v957 = vld [vmem:[%s949 + $0x1c] sm:$0xf]
    %v958 = vld [vmem:[%s949 + $0x20] sm:$0xf]
    %v959 = vld [vmem:[%s949 + $0x24] sm:$0xf]
    %v960 = vld [vmem:[%s949 + $0x28] sm:$0xf]
    %v961 = vld [vmem:[%s949 + $0x2c] sm:$0xf]
    %v962 = vld [vmem:[%s949 + $0x30] sm:$0xf]
    %v963 = vld [vmem:[%s949 + $0x34] sm:$0xf]
    %v964 = vld [vmem:[%s949 + $0x38] sm:$0xf]
    %v965 = vld [vmem:[%s949 + $0x3c] sm:$0xf]
    %v966 = vunpack.c.l.b16 %v938
    %v967 = vunpack.c.l.b16 %v941
    %v968 = vunpack.c.l.b16 %v945
    %v969 = vunpack.c.l.b16 %v948
    %v970 = vpack.c.b16 %v967, %v966
    %v971 = vpack.c.b16 %v969, %v968
    %v990 = vunpack.c.l.b16 %v950
    %v991 = vunpack.c.l.b16 %v951
    %v992 = vunpack.c.l.b16 %v952
    %v993 = vunpack.c.l.b16 %v953
    %v994 = vunpack.c.l.b16 %v954
    %v995 = vunpack.c.l.b16 %v955
    %v996 = vunpack.c.l.b16 %v956
    %v997 = vunpack.c.l.b16 %v957
    %v998 = vunpack.c.l.b16 %v958
    %v999 = vunpack.c.l.b16 %v959
    %v1000 = vunpack.c.l.b16 %v960
    %v1001 = vunpack.c.l.b16 %v961
    %v1002 = vunpack.c.l.b16 %v962
    %v1003 = vunpack.c.l.b16 %v963
    %v1004 = vunpack.c.l.b16 %v964
    %v1005 = vunpack.c.l.b16 %v965
    %v1006 = vpack.c.b16 %v991, %v990
    %v1007 = vpack.c.b16 %v993, %v992
    %v1008 = vpack.c.b16 %v995, %v994
    %v1009 = vpack.c.b16 %v997, %v996
    %v1010 = vpack.c.b16 %v999, %v998
    %v1011 = vpack.c.b16 %v1001, %v1000
    %v1012 = vpack.c.b16 %v1003, %v1002
    %v1013 = vpack.c.b16 %v1005, %v1004
    %1022 = vmatprep.subr.bf16.mxu0 0
    %1023 = vmatpush1.bf16.msra.mxu0 %v1006
    %1024 = vmatprep.subr.bf16.mxu0 0
    %1025 = vmatpush1.bf16.msra.mxu0 %v1007
    %1026 = vmatprep.subr.bf16.mxu0 0
    %1027 = vmatpush1.bf16.msra.mxu0 %v1008
    %1028 = vmatprep.subr.bf16.mxu0 0
    %1029 = vmatpush1.bf16.msra.mxu0 %v1009
    %1030 = vmatprep.subr.bf16.mxu0 0
    %1031 = vmatpush1.bf16.msra.mxu0 %v1010
    %1032 = vmatprep.subr.bf16.mxu0 0
    %1033 = vmatpush1.bf16.msra.mxu0 %v1011
    %1034 = vmatprep.subr.bf16.mxu0 0
    %1035 = vmatpush1.bf16.msra.mxu0 %v1012
    %1036 = vmatprep.subr.bf16.mxu0 0
    %1037 = vmatpush1.bf16.msra.mxu0 %v1013
    %1038 = vmatprep.subr.bf16.mxu0 0
    %1039 = vmatpush1.bf16.msra.mxu0 0
    %1040 = vmatprep.subr.bf16.mxu0 0
    %1041 = vmatpush1.bf16.msra.mxu0 0
    %1042 = vmatprep.subr.bf16.mxu0 0
    %1043 = vmatpush1.bf16.msra.mxu0 0
    %1044 = vmatprep.subr.bf16.mxu0 0
    %1045 = vmatpush1.bf16.msra.mxu0 0
    %1046 = vmatprep.subr.bf16.mxu0 0
    %1047 = vmatpush1.bf16.msra.mxu0 0
    %1048 = vmatprep.subr.bf16.mxu0 0
    %1049 = vmatpush1.bf16.msra.mxu0 0
    %1050 = vmatprep.subr.bf16.mxu0 0
    %1051 = vmatpush1.bf16.msra.mxu0 0
    %1052 = vmatprep.subr.bf16.mxu0 0
    %1053 = vmatpush1.bf16.msra.mxu0 0
    %1054 = vmatprep.mubr.bf16.mxu0 0
    %1055 = vmatmul.mubr.bf16.gmra.mrb[0].mxu0 %v970
    %v1056 = vpop.f32.mrb[0].mxu0
    %v1057 = vadd.f32 0.0, %v1056
    %v1058 = vpop.f32.mrb[0].mxu0
    %v1059 = vpop.f32.mrb[0].mxu0
    %v1060 = vadd.f32 0.0, %v1059
    %v1061 = vpop.f32.mrb[0].mxu0
    %1062 = vmatprep.mubr.bf16.mxu0 0
    %1063 = vmatmul.mubr.bf16.gmra.mrb[0].mxu0 %v971
    %v1064 = vpop.f32.mrb[0].mxu0
    %v1065 = vadd.f32 0.0, %v1064
    %v1066 = vpop.f32.mrb[0].mxu0
    %v1067 = vpop.f32.mrb[0].mxu0
    %v1068 = vadd.f32 0.0, %v1067
    %v1069 = vpop.f32.mrb[0].mxu0
    %1070 = vdwg.mxu0
    %v1071 = vadd.f32 %v915, %v1057
    %v1072 = vadd.f32 %v918, %v1060
    %v1073 = vadd.f32 %v923, %v1065
    %v1074 = vadd.f32 %v926, %v1068
    %v1075 = vld [vmem:[%s4] sm:$0x1]
    %v1077 = vlaneseq
    %v1078 = vshrl.u32 %v1077, 7
    %v1079 = vsub.s32 0, %v1078
    %v1080 = vrot.slane %v1075, %v1079
    %v1082 = vadd.f32 %v1071, %v1080
    %v1083 = vadd.f32 %v1072, %v1080
    %v1084 = vadd.f32 %v1073, %v1080
    %v1085 = vadd.f32 %v1074, %v1080
    %v1086 = vld [vmem:[#allocation2] sm:$0xf]
    %v1087 = vld [vmem:[#allocation2 + $0x4] sm:$0xf]
    %v1088 = vld [vmem:[#allocation2 + $0x8] sm:$0x1]
    %v1089 = vld [vmem:[#allocation2 + $0xc] sm:$0xf]
    %v1090 = vld [vmem:[#allocation2 + $0x10] sm:$0xf]
    %v1091 = vld [vmem:[#allocation2 + $0x14] sm:$0x1]
    %v1093 = vshrl.u32 %v1086, 16
    %v1095 = vrot.slane %v1093, 4
    %v1096 = vshll.u32 %v1086, 16
    %v1098 = vrot.slane %v1096, 5
    %v1099 = vor.u32 %v1095, %v1098
    %v1100 = vrot.slane %v1099, 4
    %v1102 = vshll.u32 %v1087, 16
    %v1104 = vrot.slane %v1102, 5
    %v1105 = vsel %vm191, %v1100, %v1104
    %v1106 = vshrl.u32 %v1087, 16
    %v1108 = vrot.slane %v1106, 4
    %v1109 = vor.u32 %v1108, %v1104
    %v1110 = vrot.slane %v1109, 4
    %v1112 = vshll.u32 %v1088, 16
    %v1114 = vrot.slane %v1112, 5
    %v1115 = vsel %vm191, %v1110, %v1114
    %v1117 = vshrl.u32 %v1089, 16
    %v1119 = vrot.slane %v1117, 4
    %v1120 = vshll.u32 %v1089, 16
    %v1122 = vrot.slane %v1120, 5
    %v1123 = vor.u32 %v1119, %v1122
    %v1124 = vrot.slane %v1123, 4
    %v1126 = vshll.u32 %v1090, 16
    %v1128 = vrot.slane %v1126, 5
    %v1129 = vsel %vm191, %v1124, %v1128
    %v1130 = vshrl.u32 %v1090, 16
    %v1132 = vrot.slane %v1130, 4
    %v1133 = vor.u32 %v1132, %v1128
    %v1134 = vrot.slane %v1133, 4
    %v1136 = vshll.u32 %v1091, 16
    %v1138 = vrot.slane %v1136, 5
    %v1139 = vsel %vm191, %v1134, %v1138
    %v1140 = vld [vmem:[#allocation10] sm:$0xf]
    %v1141 = vld [vmem:[#allocation10 + $0x4] sm:$0xf]
    %v1142 = vld [vmem:[#allocation10 + $0x8] sm:$0xf]
    %v1143 = vld [vmem:[#allocation10 + $0xc] sm:$0xf]
    %v1144 = vld [vmem:[#allocation10 + $0x10] sm:$0xf]
    %v1145 = vld [vmem:[#allocation10 + $0x14] sm:$0xf]
    %v1146 = vld [vmem:[#allocation10 + $0x18] sm:$0xf]
    %v1147 = vld [vmem:[#allocation10 + $0x1c] sm:$0xf]
    %v1148 = vunpack.c.l.b16 %v1105
    %v1149 = vunpack.c.l.b16 %v1115
    %v1150 = vunpack.c.l.b16 %v1129
    %v1151 = vunpack.c.l.b16 %v1139
    %v1152 = vpack.c.b16 %v1149, %v1148
    %v1153 = vpack.c.b16 %v1151, %v1150
    %v1162 = vunpack.c.l.b16 %v1140
    %v1163 = vunpack.c.l.b16 %v1141
    %v1164 = vunpack.c.l.b16 %v1142
    %v1165 = vunpack.c.l.b16 %v1143
    %v1166 = vunpack.c.l.b16 %v1144
    %v1167 = vunpack.c.l.b16 %v1145
    %v1168 = vunpack.c.l.b16 %v1146
    %v1169 = vunpack.c.l.b16 %v1147
    %v1170 = vpack.c.b16 %v1163, %v1162
    %v1171 = vpack.c.b16 %v1165, %v1164
    %v1172 = vpack.c.b16 %v1167, %v1166
    %v1173 = vpack.c.b16 %v1169, %v1168
    %v1179 = vsel %vm279, %v1152, 0
    %v1182 = vsel %vm279, %v1153, 0
    %1184 = vmatprep.subr.bf16.mxu0 0
    %1185 = vmatpush1.bf16.msra.mxu0 %v1170
    %1186 = vmatprep.subr.bf16.mxu0 0
    %1187 = vmatpush1.bf16.msra.mxu0 %v1171
    %1188 = vmatprep.subr.bf16.mxu0 0
    %1189 = vmatpush1.bf16.msra.mxu0 %v1172
    %1190 = vmatprep.subr.bf16.mxu0 0
    %1191 = vmatpush1.bf16.msra.mxu0 %v1173
    %1192 = vmatprep.subr.bf16.mxu0 0
    %1193 = vmatpush1.bf16.msra.mxu0 0
    %1194 = vmatprep.subr.bf16.mxu0 0
    %1195 = vmatpush1.bf16.msra.mxu0 0
    %1196 = vmatprep.subr.bf16.mxu0 0
    %1197 = vmatpush1.bf16.msra.mxu0 0
    %1198 = vmatprep.subr.bf16.mxu0 0
    %1199 = vmatpush1.bf16.msra.mxu0 0
    %1200 = vmatprep.subr.bf16.mxu0 0
    %1201 = vmatpush1.bf16.msra.mxu0 0
    %1202 = vmatprep.subr.bf16.mxu0 0
    %1203 = vmatpush1.bf16.msra.mxu0 0
    %1204 = vmatprep.subr.bf16.mxu0 0
    %1205 = vmatpush1.bf16.msra.mxu0 0
    %1206 = vmatprep.subr.bf16.mxu0 0
    %1207 = vmatpush1.bf16.msra.mxu0 0
    %1208 = vmatprep.subr.bf16.mxu0 0
    %1209 = vmatpush1.bf16.msra.mxu0 0
    %1210 = vmatprep.subr.bf16.mxu0 0
    %1211 = vmatpush1.bf16.msra.mxu0 0
    %1212 = vmatprep.subr.bf16.mxu0 0
    %1213 = vmatpush1.bf16.msra.mxu0 0
    %1214 = vmatprep.subr.bf16.mxu0 0
    %1215 = vmatpush1.bf16.msra.mxu0 0
    %1216 = vmatprep.mubr.bf16.mxu0 0
    %1217 = vmatmul.mubr.bf16.gmra.mrb[0].mxu0 %v1179
    %v1218 = vpop.f32.mrb[0].mxu0
    %v1219 = vadd.f32 0.0, %v1218
    %v1220 = vpop.f32.mrb[0].mxu0
    %v1221 = vpop.f32.mrb[0].mxu0
    %v1222 = vadd.f32 0.0, %v1221
    %v1223 = vpop.f32.mrb[0].mxu0
    %1224 = vmatprep.mubr.bf16.mxu0 0
    %1225 = vmatmul.mubr.bf16.gmra.mrb[0].mxu0 %v1182
    %v1226 = vpop.f32.mrb[0].mxu0
    %v1227 = vadd.f32 0.0, %v1226
    %v1228 = vpop.f32.mrb[0].mxu0
    %v1229 = vpop.f32.mrb[0].mxu0
    %v1230 = vadd.f32 0.0, %v1229
    %v1231 = vpop.f32.mrb[0].mxu0
    %1232 = vdwg.mxu0
    %v1233 = vadd.f32 %v1082, %v1219
    %v1234 = vadd.f32 %v1083, %v1222
    %v1235 = vadd.f32 %v1084, %v1227
    %v1236 = vadd.f32 %v1085, %v1230
    %v1237 = vmax.f32 %v1233, 0.0
    %v1238 = vmax.f32 %v1234, 0.0
    %v1239 = vmax.f32 %v1235, 0.0
    %v1240 = vmax.f32 %v1236, 0.0
    %v1241 = vpack.c.bf16 %v1238, %v1237
    %v1242 = vpack.c.bf16 %v1240, %v1239
    %v1245 = vunpack.c.l.b16 %v1241
    %v1246 = vunpack.c.h.b16 %v1241
    %v1247 = vunpack.c.l.b16 %v1242
    %v1248 = vunpack.c.h.b16 %v1242
    %v1249 = vpack.c.b16 %v1245, %v1245
    %v1250 = vpack.c.b16 %v1246, %v1246
    %v1251 = vpack.c.b16 %v1247, %v1247
    %v1252 = vpack.c.b16 %v1248, %v1248
    %1257 = vst [vmem:[#allocation12] sm:$0xf] %v1249
    %1258 = vst [vmem:[#allocation12 + $0x4] sm:$0xf] %v1250
    %1259 = vst [vmem:[#allocation12 + $0x8] sm:$0xf] %v1251
    %1260 = vst [vmem:[#allocation12 + $0xc] sm:$0xf] %v1252
    // Predicated region
    $region42: #{tpu_custom_call.1} parent=1 // pred_check
      _
    $region43: #{tpu_custom_call.1} parent=1 // pred_check_branch
      %1262 = sbr.rel (0) target = $region45
    $region44: #{tpu_custom_call.1} parent=1 // pred_region
      %s1264 = ssub.s32 256, 256
      %1265 = vsyncadd [#allocation6], %s1264
      %s1266 = sshll.u32 [#allocation12], 4
      %s1267 = int_to_ptr.vmem [resolvable:$true] %s1266
      %1272 = dma.vmem_to_hbm [thread:$0]  %s1267, 256, %s6, [#allocation6], 64, 64, 4
    $region45: #{tpu_custom_call.1} parent=1 // pred_fallthru
      _
    // Predicated region
    $region46: #{tpu_custom_call.1} parent=1 // pred_check
      _
    $region47: #{tpu_custom_call.1} parent=1 // pred_check_branch
      %1274 = sbr.rel (0) target = $region49
    $region48: #{tpu_custom_call.1} parent=1 // pred_region
      %1275 = dma.done [#allocation6], 256
    $region49: #{tpu_custom_call.1} parent=1 // pred_fallthru
      _
    %1276 = vsyncpa [#allocation5], 1
    %1277 = vsyncpa [#allocation8], 1
    %1278 = vsyncpa [#allocation11], 1
    %1279 = vsyncpa [#allocation6], 1

</llo_original>
